<compile_context>
chip_gen: v5e
topology: v5e:2x2
jax: 0.10.0
libtpu: 0.0.40
codegen_flags: <defaults>
</compile_context>

<pallas_src>
import functools

import jax
import jax.numpy as jnp
from jax.experimental import pallas as pl
from jax.experimental.pallas import tpu as pltpu


# ----------------------------------------------------------------------------
# Fused kernel: all layers, all timesteps, fc + softmax.
# ----------------------------------------------------------------------------
def _fused_lstm_classifier_kernel(n_layers, seq_len, n_hidden, *refs):
    L, T, M = n_layers, seq_len, n_hidden

    x_ref = refs[0]                          # (T, B, D) bf16, time-major
    layer_refs = refs[1:1 + 3 * L]           # (w_ih, w_hh, b) triples per layer
    wfc_ref = refs[1 + 3 * L]                # (M, K) bf16
    bfc_ref = refs[2 + 3 * L]                # (1, K) f32
    o_ref = refs[-1]                         # (B, K) f32

    B = x_ref.shape[1]

    seq = x_ref[...]                         # (T, B, Din) bf16, layer-0 input
    h = None
    for l in range(L):
        w_ih_ref = layer_refs[3 * l + 0]     # (Din, 4M) bf16
        w_hh_ref = layer_refs[3 * l + 1]     # (M,   4M) bf16
        b_ref = layer_refs[3 * l + 2]        # (1,   4M) f32
        Din = w_ih_ref.shape[0]

        # Hoisted input projection + bias over ALL timesteps: one MXU dot per
        # layer, off the serial recurrence critical path.
        gx = jnp.dot(seq.reshape(T * B, Din), w_ih_ref[...],
                     preferred_element_type=jnp.float32) + b_ref[...]
        gx = gx.reshape(T, B, 4 * M)         # (T, B, 4M) f32, leading-axis sliced

        h = jnp.zeros((B, M), jnp.float32)
        c = jnp.zeros((B, M), jnp.float32)
        outs = []
        for t in range(T):
            # Critical path per step: one recurrent dot + gate math only.
            gates = gx[t] + jnp.dot(h.astype(jnp.bfloat16), w_hh_ref[...],
                                    preferred_element_type=jnp.float32)   # (B, 4M)

            # Host-side gate order is (i, f, o, g): sigmoid on the first 3M
            # lanes, tanh on the last M lanes -- no wasted transcendentals.
            sg = jax.nn.sigmoid(gates[:, :3 * M])
            g_g = jnp.tanh(gates[:, 3 * M:])
            i_g = sg[:, 0 * M:1 * M]
            f_g = sg[:, 1 * M:2 * M]
            o_g = sg[:, 2 * M:3 * M]

            c = f_g * c + i_g * g_g
            h = o_g * jnp.tanh(c)
            if l < L - 1:
                outs.append(h.astype(jnp.bfloat16))

        if l < L - 1:
            # (T, B, M) bf16 hidden sequence stays in-kernel (no HBM trip).
            seq = jnp.stack(outs, axis=0)

    # Classifier on hn[-1] (last layer, last timestep) + exact softmax(dim=1).
    logits = jnp.dot(h.astype(jnp.bfloat16), wfc_ref[...],
                     preferred_element_type=jnp.float32) + bfc_ref[...]   # (B, K)
    m = jnp.max(logits, axis=1, keepdims=True)
    e = jnp.exp(logits - m)
    o_ref[...] = e / jnp.sum(e, axis=1, keepdims=True)


def lstm_classifier_forward_impl(params, x_btd):
    """x_btd: (B, T, D) batch-first, like nn.LSTM(batch_first=True)."""
    B, T, D = x_btd.shape
    layers = params["layers"]
    L = len(layers)
    M = layers[0]["w_hh"].shape[0]
    K = params["w_fc"].shape[1]

    # Pad batch up to the 8-row sublane tile; padded rows are sliced off below.
    Bp = max(8, int(pl.cdiv(B, 8)) * 8)
    x_pad = jnp.pad(x_btd, ((0, Bp - B), (0, 0), (0, 0)))
    # Time-major layout: per-step reads inside the kernel are leading-axis.
    x_tbd = jnp.transpose(x_pad, (1, 0, 2)).astype(jnp.bfloat16)

    in_arrays = [x_tbd]
    in_specs = [pl.BlockSpec((T, Bp, D), lambda i: (0, 0, 0))]
    for lp in layers:
        din = lp["w_ih"].shape[0]
        in_arrays += [lp["w_ih"], lp["w_hh"], lp["b"]]
        in_specs += [
            pl.BlockSpec((din, 4 * M), lambda i: (0, 0)),
            pl.BlockSpec((M, 4 * M), lambda i: (0, 0)),
            pl.BlockSpec((1, 4 * M), lambda i: (0, 0)),
        ]
    in_arrays += [params["w_fc"], params["b_fc"]]
    in_specs += [
        pl.BlockSpec((M, K), lambda i: (0, 0)),
        pl.BlockSpec((1, K), lambda i: (0, 0)),
    ]

    kernel = functools.partial(_fused_lstm_classifier_kernel, L, T, M)

    out = pl.pallas_call(
        kernel,
        out_shape=jax.ShapeDtypeStruct((Bp, K), jnp.float32),
        grid_spec=pltpu.PrefetchScalarGridSpec(
            num_scalar_prefetch=0,
            grid=(1,),
            in_specs=in_specs,
            out_specs=pl.BlockSpec((Bp, K), lambda i: (0, 0)),
        ),
        compiler_params=pltpu.CompilerParams(
            dimension_semantics=("arbitrary",),
        ),
    )(*in_arrays)
    return out[:B]


lstm_classifier_forward = jax.jit(lstm_classifier_forward_impl)


# ----------------------------------------------------------------------------
# Parameters: PyTorch-style init (raw f32) + kernel-ready reordered bf16 form.
# ----------------------------------------------------------------------------
def init_raw_params(key, n_inputs, n_hidden, n_layers, n_output):
    """U(-1/sqrt(M), 1/sqrt(M)) init, PyTorch weight layout, f32."""
    bound = 1.0 / jnp.sqrt(jnp.float32(n_hidden))
    raw = {"layers": []}
    for layer in range(n_layers):
        din = n_inputs if layer == 0 else n_hidden
        key, k1, k2, k3, k4 = jax.random.split(key, 5)
        raw["layers"].append({
            "w_ih": jax.random.uniform(k1, (4 * n_hidden, din), jnp.float32, -bound, bound),
            "w_hh": jax.random.uniform(k2, (4 * n_hidden, n_hidden), jnp.float32, -bound, bound),
            "b_ih": jax.random.uniform(k3, (4 * n_hidden,), jnp.float32, -bound, bound),
            "b_hh": jax.random.uniform(k4, (4 * n_hidden,), jnp.float32, -bound, bound),
        })
    key, k5, k6 = jax.random.split(key, 3)
    raw["w_fc"] = jax.random.uniform(k5, (n_output, n_hidden), jnp.float32, -bound, bound)
    raw["b_fc"] = jax.random.uniform(k6, (n_output,), jnp.float32, -bound, bound)
    return raw


def _reorder_ifgo_to_ifog(a, M):
    """Reorder last-axis gate blocks from PyTorch (i,f,g,o) to kernel (i,f,o,g)."""
    i_b = a[..., 0 * M:1 * M]
    f_b = a[..., 1 * M:2 * M]
    g_b = a[..., 2 * M:3 * M]
    o_b = a[..., 3 * M:4 * M]
    return jnp.concatenate([i_b, f_b, o_b, g_b], axis=-1)


def prepare_pallas_params(raw):
    """Transpose to (Din,4M)/(M,4M), reorder gates (i,f,o,g), fold biases, cast bf16."""
    params = {"layers": []}
    for lp in raw["layers"]:
        M = lp["w_hh"].shape[1]
        w_ih = _reorder_ifgo_to_ifog(lp["w_ih"].T, M)                       # (Din, 4M)
        w_hh = _reorder_ifgo_to_ifog(lp["w_hh"].T, M)                       # (M, 4M)
        b = _reorder_ifgo_to_ifog((lp["b_ih"] + lp["b_hh"]).reshape(1, -1), M)
        params["layers"].append({
            "w_ih": w_ih.astype(jnp.bfloat16),
            "w_hh": w_hh.astype(jnp.bfloat16),
            "b": b.astype(jnp.float32),
        })
    params["w_fc"] = raw["w_fc"].T.astype(jnp.bfloat16)                     # (M, K)
    params["b_fc"] = raw["b_fc"].reshape(1, -1).astype(jnp.float32)         # (1, K)
    return params


# ----------------------------------------------------------------------------
# Pure-JAX f32 reference (mirrors the PyTorch module) for validation.
# ----------------------------------------------------------------------------
def reference_forward(raw, x_btd):
    B, T, _ = x_btd.shape
    M = raw["layers"][0]["w_hh"].shape[1]
    seq = x_btd
    h = None
    for lp in raw["layers"]:
        b = lp["b_ih"] + lp["b_hh"]
        h = jnp.zeros((B, M), jnp.float32)
        c = jnp.zeros((B, M), jnp.float32)
        outs = []
        for t in range(T):
            g = seq[:, t, :] @ lp["w_ih"].T + h @ lp["w_hh"].T + b
            i_g = jax.nn.sigmoid(g[:, 0 * M:1 * M])
            f_g = jax.nn.sigmoid(g[:, 1 * M:2 * M])
            g_g = jnp.tanh(g[:, 2 * M:3 * M])
            o_g = jax.nn.sigmoid(g[:, 3 * M:4 * M])
            c = f_g * c + i_g * g_g
            h = o_g * jnp.tanh(c)
            outs.append(h)
        seq = jnp.stack(outs, axis=1)
    logits = h @ raw["w_fc"].T + raw["b_fc"]
    return jax.nn.softmax(logits, axis=1)


if __name__ == "__main__":
    B, T = 2, 8                  # batch, sequence length
    D, M, L, K = 16, 32, 2, 8    # nInputs, nHidden, nLayers, nOutput

    key = jax.random.PRNGKey(0)
    key_x, key_p = jax.random.split(key)
    x = jax.random.normal(key_x, (B, T, D), dtype=jnp.float32)

    raw = init_raw_params(key_p, D, M, L, K)
    params = prepare_pallas_params(raw)

    probs = lstm_classifier_forward(params, x)
    probs = jax.block_until_ready(probs)

    assert probs.shape == (B, K)
    # Exact softmax normalization: rows sum to 1.
    assert jnp.allclose(jnp.sum(probs, axis=1), 1.0, atol=1e-4)
    # Matches the f32 pure-JAX reference within bf16 matmul tolerance.
    ref = reference_forward(raw, x)
    assert jnp.allclose(probs, ref, atol=3e-2), float(jnp.max(jnp.abs(probs - ref)))
    print("KERNEL_OK")
</pallas_src>

<mosaic_0001>
module attributes {stable_mosaic.version = 11 : i64} {
  func.func @_fused_lstm_classifier_kernel(%arg0: i32, %arg1: memref<8x8x16xbf16, #tpu.memory_space<vmem>>, %arg2: memref<16x128xbf16, #tpu.memory_space<vmem>>, %arg3: memref<32x128xbf16, #tpu.memory_space<vmem>>, %arg4: memref<1x128xf32, #tpu.memory_space<vmem>>, %arg5: memref<32x128xbf16, #tpu.memory_space<vmem>>, %arg6: memref<32x128xbf16, #tpu.memory_space<vmem>>, %arg7: memref<1x128xf32, #tpu.memory_space<vmem>>, %arg8: memref<32x8xbf16, #tpu.memory_space<vmem>>, %arg9: memref<1x8xf32, #tpu.memory_space<vmem>>, %arg10: memref<8x8xf32, #tpu.memory_space<vmem>>) attributes {dimension_semantics = [#tpu.dimension_semantics<arbitrary>], iteration_bounds = array<i64: 1>, scalar_prefetch = 0 : i64, scratch_operands = 0 : i64, tpu.core_type = #tpu.core_type<tc>, window_params = [{pipeline_mode = #tpu.pipeline_mode<synchronous>, transform_indices = @transform_0, window_bounds = array<i64: 8, 8, 16>}, {pipeline_mode = #tpu.pipeline_mode<synchronous>, transform_indices = @transform_1, window_bounds = array<i64: 16, 128>}, {pipeline_mode = #tpu.pipeline_mode<synchronous>, transform_indices = @transform_2, window_bounds = array<i64: 32, 128>}, {pipeline_mode = #tpu.pipeline_mode<synchronous>, transform_indices = @transform_3, window_bounds = array<i64: 1, 128>}, {pipeline_mode = #tpu.pipeline_mode<synchronous>, transform_indices = @transform_4, window_bounds = array<i64: 32, 128>}, {pipeline_mode = #tpu.pipeline_mode<synchronous>, transform_indices = @transform_5, window_bounds = array<i64: 32, 128>}, {pipeline_mode = #tpu.pipeline_mode<synchronous>, transform_indices = @transform_6, window_bounds = array<i64: 1, 128>}, {pipeline_mode = #tpu.pipeline_mode<synchronous>, transform_indices = @transform_7, window_bounds = array<i64: 32, 8>}, {pipeline_mode = #tpu.pipeline_mode<synchronous>, transform_indices = @transform_8, window_bounds = array<i64: 1, 8>}, {pipeline_mode = #tpu.pipeline_mode<synchronous>, transform_indices = @transform_9, window_bounds = array<i64: 8, 8>}]} {
    %c0 = arith.constant 0 : index
    %c0_0 = arith.constant 0 : index
    %c0_1 = arith.constant 0 : index
    %0 = vector.load %arg1[%c0, %c0_0, %c0_1] : memref<8x8x16xbf16, #tpu.memory_space<vmem>>, vector<8x8x16xbf16>
    %1 = vector.shape_cast %0 : vector<8x8x16xbf16> to vector<64x16xbf16>
    %c0_2 = arith.constant 0 : index
    %c0_3 = arith.constant 0 : index
    %2 = vector.load %arg2[%c0_2, %c0_3] : memref<16x128xbf16, #tpu.memory_space<vmem>>, vector<16x128xbf16>
    %cst = arith.constant dense<0.000000e+00> : vector<64x128xf32>
    %3 = tpu.matmul %1, %2, %cst {dimension_numbers = #tpu.dot_dimension_numbers<[1], [0], [0], [1], [0, 0, 1, 1], [], []>} : vector<64x16xbf16>, vector<16x128xbf16>, vector<64x128xf32> -> vector<64x128xf32>
    %c0_4 = arith.constant 0 : index
    %c0_5 = arith.constant 0 : index
    %4 = vector.load %arg4[%c0_4, %c0_5] : memref<1x128xf32, #tpu.memory_space<vmem>>, vector<1x128xf32>
    %5 = vector.broadcast %4 : vector<1x128xf32> to vector<64x128xf32>
    %6 = arith.addf %3, %5 : vector<64x128xf32>
    %7 = vector.shape_cast %6 : vector<64x128xf32> to vector<8x8x128xf32>
    %cst_6 = arith.constant 0.000000e+00 : f32
    %8 = vector.broadcast %cst_6 : f32 to vector<8x32xf32>
    %cst_7 = arith.constant 0.000000e+00 : f32
    %9 = vector.broadcast %cst_7 : f32 to vector<8x32xf32>
    %10 = vector.extract_strided_slice %7 {offsets = [0, 0, 0], sizes = [1, 8, 128], strides = [1, 1, 1]} : vector<8x8x128xf32> to vector<1x8x128xf32>
    %11 = vector.shape_cast %10 : vector<1x8x128xf32> to vector<8x128xf32>
    %12 = arith.truncf %8 : vector<8x32xf32> to vector<8x32xbf16>
    %c0_8 = arith.constant 0 : index
    %c0_9 = arith.constant 0 : index
    %13 = vector.load %arg3[%c0_8, %c0_9] : memref<32x128xbf16, #tpu.memory_space<vmem>>, vector<32x128xbf16>
    %cst_10 = arith.constant dense<0.000000e+00> : vector<8x128xf32>
    %14 = tpu.matmul %12, %13, %cst_10 {dimension_numbers = #tpu.dot_dimension_numbers<[1], [0], [0], [1], [0, 0, 1, 1], [], []>} : vector<8x32xbf16>, vector<32x128xbf16>, vector<8x128xf32> -> vector<8x128xf32>
    %15 = arith.addf %11, %14 : vector<8x128xf32>
    %16 = vector.extract_strided_slice %15 {offsets = [0, 0], sizes = [8, 96], strides = [1, 1]} : vector<8x128xf32> to vector<8x96xf32>
    %17 = arith.negf %16 : vector<8x96xf32>
    %18 = math.exp %17 : vector<8x96xf32>
    %cst_11 = arith.constant 1.000000e+00 : f32
    %19 = vector.broadcast %cst_11 : f32 to vector<8x96xf32>
    %20 = arith.addf %19, %18 : vector<8x96xf32>
    %21 = arith.divf %19, %20 : vector<8x96xf32>
    %22 = vector.extract_strided_slice %15 {offsets = [0, 96], sizes = [8, 32], strides = [1, 1]} : vector<8x128xf32> to vector<8x32xf32>
    %23 = math.tanh %22 : vector<8x32xf32>
    %24 = vector.extract_strided_slice %21 {offsets = [0, 0], sizes = [8, 32], strides = [1, 1]} : vector<8x96xf32> to vector<8x32xf32>
    %25 = vector.extract_strided_slice %21 {offsets = [0, 32], sizes = [8, 32], strides = [1, 1]} : vector<8x96xf32> to vector<8x32xf32>
    %26 = vector.extract_strided_slice %21 {offsets = [0, 64], sizes = [8, 32], strides = [1, 1]} : vector<8x96xf32> to vector<8x32xf32>
    %27 = arith.mulf %25, %9 : vector<8x32xf32>
    %28 = arith.mulf %24, %23 : vector<8x32xf32>
    %29 = arith.addf %27, %28 : vector<8x32xf32>
    %30 = math.tanh %29 : vector<8x32xf32>
    %31 = arith.mulf %26, %30 : vector<8x32xf32>
    %32 = arith.truncf %31 : vector<8x32xf32> to vector<8x32xbf16>
    %33 = vector.extract_strided_slice %7 {offsets = [1, 0, 0], sizes = [1, 8, 128], strides = [1, 1, 1]} : vector<8x8x128xf32> to vector<1x8x128xf32>
    %34 = vector.shape_cast %33 : vector<1x8x128xf32> to vector<8x128xf32>
    %35 = arith.truncf %31 : vector<8x32xf32> to vector<8x32xbf16>
    %c0_12 = arith.constant 0 : index
    %c0_13 = arith.constant 0 : index
    %36 = vector.load %arg3[%c0_12, %c0_13] : memref<32x128xbf16, #tpu.memory_space<vmem>>, vector<32x128xbf16>
    %cst_14 = arith.constant dense<0.000000e+00> : vector<8x128xf32>
    %37 = tpu.matmul %35, %36, %cst_14 {dimension_numbers = #tpu.dot_dimension_numbers<[1], [0], [0], [1], [0, 0, 1, 1], [], []>} : vector<8x32xbf16>, vector<32x128xbf16>, vector<8x128xf32> -> vector<8x128xf32>
    %38 = arith.addf %34, %37 : vector<8x128xf32>
    %39 = vector.extract_strided_slice %38 {offsets = [0, 0], sizes = [8, 96], strides = [1, 1]} : vector<8x128xf32> to vector<8x96xf32>
    %40 = arith.negf %39 : vector<8x96xf32>
    %41 = math.exp %40 : vector<8x96xf32>
    %cst_15 = arith.constant 1.000000e+00 : f32
    %42 = vector.broadcast %cst_15 : f32 to vector<8x96xf32>
    %43 = arith.addf %42, %41 : vector<8x96xf32>
    %44 = arith.divf %42, %43 : vector<8x96xf32>
    %45 = vector.extract_strided_slice %38 {offsets = [0, 96], sizes = [8, 32], strides = [1, 1]} : vector<8x128xf32> to vector<8x32xf32>
    %46 = math.tanh %45 : vector<8x32xf32>
    %47 = vector.extract_strided_slice %44 {offsets = [0, 0], sizes = [8, 32], strides = [1, 1]} : vector<8x96xf32> to vector<8x32xf32>
    %48 = vector.extract_strided_slice %44 {offsets = [0, 32], sizes = [8, 32], strides = [1, 1]} : vector<8x96xf32> to vector<8x32xf32>
    %49 = vector.extract_strided_slice %44 {offsets = [0, 64], sizes = [8, 32], strides = [1, 1]} : vector<8x96xf32> to vector<8x32xf32>
    %50 = arith.mulf %48, %29 : vector<8x32xf32>
    %51 = arith.mulf %47, %46 : vector<8x32xf32>
    %52 = arith.addf %50, %51 : vector<8x32xf32>
    %53 = math.tanh %52 : vector<8x32xf32>
    %54 = arith.mulf %49, %53 : vector<8x32xf32>
    %55 = arith.truncf %54 : vector<8x32xf32> to vector<8x32xbf16>
    %56 = vector.extract_strided_slice %7 {offsets = [2, 0, 0], sizes = [1, 8, 128], strides = [1, 1, 1]} : vector<8x8x128xf32> to vector<1x8x128xf32>
    %57 = vector.shape_cast %56 : vector<1x8x128xf32> to vector<8x128xf32>
    %58 = arith.truncf %54 : vector<8x32xf32> to vector<8x32xbf16>
    %c0_16 = arith.constant 0 : index
    %c0_17 = arith.constant 0 : index
    %59 = vector.load %arg3[%c0_16, %c0_17] : memref<32x128xbf16, #tpu.memory_space<vmem>>, vector<32x128xbf16>
    %cst_18 = arith.constant dense<0.000000e+00> : vector<8x128xf32>
    %60 = tpu.matmul %58, %59, %cst_18 {dimension_numbers = #tpu.dot_dimension_numbers<[1], [0], [0], [1], [0, 0, 1, 1], [], []>} : vector<8x32xbf16>, vector<32x128xbf16>, vector<8x128xf32> -> vector<8x128xf32>
    %61 = arith.addf %57, %60 : vector<8x128xf32>
    %62 = vector.extract_strided_slice %61 {offsets = [0, 0], sizes = [8, 96], strides = [1, 1]} : vector<8x128xf32> to vector<8x96xf32>
    %63 = arith.negf %62 : vector<8x96xf32>
    %64 = math.exp %63 : vector<8x96xf32>
    %cst_19 = arith.constant 1.000000e+00 : f32
    %65 = vector.broadcast %cst_19 : f32 to vector<8x96xf32>
    %66 = arith.addf %65, %64 : vector<8x96xf32>
    %67 = arith.divf %65, %66 : vector<8x96xf32>
    %68 = vector.extract_strided_slice %61 {offsets = [0, 96], sizes = [8, 32], strides = [1, 1]} : vector<8x128xf32> to vector<8x32xf32>
    %69 = math.tanh %68 : vector<8x32xf32>
    %70 = vector.extract_strided_slice %67 {offsets = [0, 0], sizes = [8, 32], strides = [1, 1]} : vector<8x96xf32> to vector<8x32xf32>
    %71 = vector.extract_strided_slice %67 {offsets = [0, 32], sizes = [8, 32], strides = [1, 1]} : vector<8x96xf32> to vector<8x32xf32>
    %72 = vector.extract_strided_slice %67 {offsets = [0, 64], sizes = [8, 32], strides = [1, 1]} : vector<8x96xf32> to vector<8x32xf32>
    %73 = arith.mulf %71, %52 : vector<8x32xf32>
    %74 = arith.mulf %70, %69 : vector<8x32xf32>
    %75 = arith.addf %73, %74 : vector<8x32xf32>
    %76 = math.tanh %75 : vector<8x32xf32>
    %77 = arith.mulf %72, %76 : vector<8x32xf32>
    %78 = arith.truncf %77 : vector<8x32xf32> to vector<8x32xbf16>
    %79 = vector.extract_strided_slice %7 {offsets = [3, 0, 0], sizes = [1, 8, 128], strides = [1, 1, 1]} : vector<8x8x128xf32> to vector<1x8x128xf32>
    %80 = vector.shape_cast %79 : vector<1x8x128xf32> to vector<8x128xf32>
    %81 = arith.truncf %77 : vector<8x32xf32> to vector<8x32xbf16>
    %c0_20 = arith.constant 0 : index
    %c0_21 = arith.constant 0 : index
    %82 = vector.load %arg3[%c0_20, %c0_21] : memref<32x128xbf16, #tpu.memory_space<vmem>>, vector<32x128xbf16>
    %cst_22 = arith.constant dense<0.000000e+00> : vector<8x128xf32>
    %83 = tpu.matmul %81, %82, %cst_22 {dimension_numbers = #tpu.dot_dimension_numbers<[1], [0], [0], [1], [0, 0, 1, 1], [], []>} : vector<8x32xbf16>, vector<32x128xbf16>, vector<8x128xf32> -> vector<8x128xf32>
    %84 = arith.addf %80, %83 : vector<8x128xf32>
    %85 = vector.extract_strided_slice %84 {offsets = [0, 0], sizes = [8, 96], strides = [1, 1]} : vector<8x128xf32> to vector<8x96xf32>
    %86 = arith.negf %85 : vector<8x96xf32>
    %87 = math.exp %86 : vector<8x96xf32>
    %cst_23 = arith.constant 1.000000e+00 : f32
    %88 = vector.broadcast %cst_23 : f32 to vector<8x96xf32>
    %89 = arith.addf %88, %87 : vector<8x96xf32>
    %90 = arith.divf %88, %89 : vector<8x96xf32>
    %91 = vector.extract_strided_slice %84 {offsets = [0, 96], sizes = [8, 32], strides = [1, 1]} : vector<8x128xf32> to vector<8x32xf32>
    %92 = math.tanh %91 : vector<8x32xf32>
    %93 = vector.extract_strided_slice %90 {offsets = [0, 0], sizes = [8, 32], strides = [1, 1]} : vector<8x96xf32> to vector<8x32xf32>
    %94 = vector.extract_strided_slice %90 {offsets = [0, 32], sizes = [8, 32], strides = [1, 1]} : vector<8x96xf32> to vector<8x32xf32>
    %95 = vector.extract_strided_slice %90 {offsets = [0, 64], sizes = [8, 32], strides = [1, 1]} : vector<8x96xf32> to vector<8x32xf32>
    %96 = arith.mulf %94, %75 : vector<8x32xf32>
    %97 = arith.mulf %93, %92 : vector<8x32xf32>
    %98 = arith.addf %96, %97 : vector<8x32xf32>
    %99 = math.tanh %98 : vector<8x32xf32>
    %100 = arith.mulf %95, %99 : vector<8x32xf32>
    %101 = arith.truncf %100 : vector<8x32xf32> to vector<8x32xbf16>
    %102 = vector.extract_strided_slice %7 {offsets = [4, 0, 0], sizes = [1, 8, 128], strides = [1, 1, 1]} : vector<8x8x128xf32> to vector<1x8x128xf32>
    %103 = vector.shape_cast %102 : vector<1x8x128xf32> to vector<8x128xf32>
    %104 = arith.truncf %100 : vector<8x32xf32> to vector<8x32xbf16>
    %c0_24 = arith.constant 0 : index
    %c0_25 = arith.constant 0 : index
    %105 = vector.load %arg3[%c0_24, %c0_25] : memref<32x128xbf16, #tpu.memory_space<vmem>>, vector<32x128xbf16>
    %cst_26 = arith.constant dense<0.000000e+00> : vector<8x128xf32>
    %106 = tpu.matmul %104, %105, %cst_26 {dimension_numbers = #tpu.dot_dimension_numbers<[1], [0], [0], [1], [0, 0, 1, 1], [], []>} : vector<8x32xbf16>, vector<32x128xbf16>, vector<8x128xf32> -> vector<8x128xf32>
    %107 = arith.addf %103, %106 : vector<8x128xf32>
    %108 = vector.extract_strided_slice %107 {offsets = [0, 0], sizes = [8, 96], strides = [1, 1]} : vector<8x128xf32> to vector<8x96xf32>
    %109 = arith.negf %108 : vector<8x96xf32>
    %110 = math.exp %109 : vector<8x96xf32>
    %cst_27 = arith.constant 1.000000e+00 : f32
    %111 = vector.broadcast %cst_27 : f32 to vector<8x96xf32>
    %112 = arith.addf %111, %110 : vector<8x96xf32>
    %113 = arith.divf %111, %112 : vector<8x96xf32>
    %114 = vector.extract_strided_slice %107 {offsets = [0, 96], sizes = [8, 32], strides = [1, 1]} : vector<8x128xf32> to vector<8x32xf32>
    %115 = math.tanh %114 : vector<8x32xf32>
    %116 = vector.extract_strided_slice %113 {offsets = [0, 0], sizes = [8, 32], strides = [1, 1]} : vector<8x96xf32> to vector<8x32xf32>
    %117 = vector.extract_strided_slice %113 {offsets = [0, 32], sizes = [8, 32], strides = [1, 1]} : vector<8x96xf32> to vector<8x32xf32>
    %118 = vector.extract_strided_slice %113 {offsets = [0, 64], sizes = [8, 32], strides = [1, 1]} : vector<8x96xf32> to vector<8x32xf32>
    %119 = arith.mulf %117, %98 : vector<8x32xf32>
    %120 = arith.mulf %116, %115 : vector<8x32xf32>
    %121 = arith.addf %119, %120 : vector<8x32xf32>
    %122 = math.tanh %121 : vector<8x32xf32>
    %123 = arith.mulf %118, %122 : vector<8x32xf32>
    %124 = arith.truncf %123 : vector<8x32xf32> to vector<8x32xbf16>
    %125 = vector.extract_strided_slice %7 {offsets = [5, 0, 0], sizes = [1, 8, 128], strides = [1, 1, 1]} : vector<8x8x128xf32> to vector<1x8x128xf32>
    %126 = vector.shape_cast %125 : vector<1x8x128xf32> to vector<8x128xf32>
    %127 = arith.truncf %123 : vector<8x32xf32> to vector<8x32xbf16>
    %c0_28 = arith.constant 0 : index
    %c0_29 = arith.constant 0 : index
    %128 = vector.load %arg3[%c0_28, %c0_29] : memref<32x128xbf16, #tpu.memory_space<vmem>>, vector<32x128xbf16>
    %cst_30 = arith.constant dense<0.000000e+00> : vector<8x128xf32>
    %129 = tpu.matmul %127, %128, %cst_30 {dimension_numbers = #tpu.dot_dimension_numbers<[1], [0], [0], [1], [0, 0, 1, 1], [], []>} : vector<8x32xbf16>, vector<32x128xbf16>, vector<8x128xf32> -> vector<8x128xf32>
    %130 = arith.addf %126, %129 : vector<8x128xf32>
    %131 = vector.extract_strided_slice %130 {offsets = [0, 0], sizes = [8, 96], strides = [1, 1]} : vector<8x128xf32> to vector<8x96xf32>
    %132 = arith.negf %131 : vector<8x96xf32>
    %133 = math.exp %132 : vector<8x96xf32>
    %cst_31 = arith.constant 1.000000e+00 : f32
    %134 = vector.broadcast %cst_31 : f32 to vector<8x96xf32>
    %135 = arith.addf %134, %133 : vector<8x96xf32>
    %136 = arith.divf %134, %135 : vector<8x96xf32>
    %137 = vector.extract_strided_slice %130 {offsets = [0, 96], sizes = [8, 32], strides = [1, 1]} : vector<8x128xf32> to vector<8x32xf32>
    %138 = math.tanh %137 : vector<8x32xf32>
    %139 = vector.extract_strided_slice %136 {offsets = [0, 0], sizes = [8, 32], strides = [1, 1]} : vector<8x96xf32> to vector<8x32xf32>
    %140 = vector.extract_strided_slice %136 {offsets = [0, 32], sizes = [8, 32], strides = [1, 1]} : vector<8x96xf32> to vector<8x32xf32>
    %141 = vector.extract_strided_slice %136 {offsets = [0, 64], sizes = [8, 32], strides = [1, 1]} : vector<8x96xf32> to vector<8x32xf32>
    %142 = arith.mulf %140, %121 : vector<8x32xf32>
    %143 = arith.mulf %139, %138 : vector<8x32xf32>
    %144 = arith.addf %142, %143 : vector<8x32xf32>
    %145 = math.tanh %144 : vector<8x32xf32>
    %146 = arith.mulf %141, %145 : vector<8x32xf32>
    %147 = arith.truncf %146 : vector<8x32xf32> to vector<8x32xbf16>
    %148 = vector.extract_strided_slice %7 {offsets = [6, 0, 0], sizes = [1, 8, 128], strides = [1, 1, 1]} : vector<8x8x128xf32> to vector<1x8x128xf32>
    %149 = vector.shape_cast %148 : vector<1x8x128xf32> to vector<8x128xf32>
    %150 = arith.truncf %146 : vector<8x32xf32> to vector<8x32xbf16>
    %c0_32 = arith.constant 0 : index
    %c0_33 = arith.constant 0 : index
    %151 = vector.load %arg3[%c0_32, %c0_33] : memref<32x128xbf16, #tpu.memory_space<vmem>>, vector<32x128xbf16>
    %cst_34 = arith.constant dense<0.000000e+00> : vector<8x128xf32>
    %152 = tpu.matmul %150, %151, %cst_34 {dimension_numbers = #tpu.dot_dimension_numbers<[1], [0], [0], [1], [0, 0, 1, 1], [], []>} : vector<8x32xbf16>, vector<32x128xbf16>, vector<8x128xf32> -> vector<8x128xf32>
    %153 = arith.addf %149, %152 : vector<8x128xf32>
    %154 = vector.extract_strided_slice %153 {offsets = [0, 0], sizes = [8, 96], strides = [1, 1]} : vector<8x128xf32> to vector<8x96xf32>
    %155 = arith.negf %154 : vector<8x96xf32>
    %156 = math.exp %155 : vector<8x96xf32>
    %cst_35 = arith.constant 1.000000e+00 : f32
    %157 = vector.broadcast %cst_35 : f32 to vector<8x96xf32>
    %158 = arith.addf %157, %156 : vector<8x96xf32>
    %159 = arith.divf %157, %158 : vector<8x96xf32>
    %160 = vector.extract_strided_slice %153 {offsets = [0, 96], sizes = [8, 32], strides = [1, 1]} : vector<8x128xf32> to vector<8x32xf32>
    %161 = math.tanh %160 : vector<8x32xf32>
    %162 = vector.extract_strided_slice %159 {offsets = [0, 0], sizes = [8, 32], strides = [1, 1]} : vector<8x96xf32> to vector<8x32xf32>
    %163 = vector.extract_strided_slice %159 {offsets = [0, 32], sizes = [8, 32], strides = [1, 1]} : vector<8x96xf32> to vector<8x32xf32>
    %164 = vector.extract_strided_slice %159 {offsets = [0, 64], sizes = [8, 32], strides = [1, 1]} : vector<8x96xf32> to vector<8x32xf32>
    %165 = arith.mulf %163, %144 : vector<8x32xf32>
    %166 = arith.mulf %162, %161 : vector<8x32xf32>
    %167 = arith.addf %165, %166 : vector<8x32xf32>
    %168 = math.tanh %167 : vector<8x32xf32>
    %169 = arith.mulf %164, %168 : vector<8x32xf32>
    %170 = arith.truncf %169 : vector<8x32xf32> to vector<8x32xbf16>
    %171 = vector.extract_strided_slice %7 {offsets = [7, 0, 0], sizes = [1, 8, 128], strides = [1, 1, 1]} : vector<8x8x128xf32> to vector<1x8x128xf32>
    %172 = vector.shape_cast %171 : vector<1x8x128xf32> to vector<8x128xf32>
    %173 = arith.truncf %169 : vector<8x32xf32> to vector<8x32xbf16>
    %c0_36 = arith.constant 0 : index
    %c0_37 = arith.constant 0 : index
    %174 = vector.load %arg3[%c0_36, %c0_37] : memref<32x128xbf16, #tpu.memory_space<vmem>>, vector<32x128xbf16>
    %cst_38 = arith.constant dense<0.000000e+00> : vector<8x128xf32>
    %175 = tpu.matmul %173, %174, %cst_38 {dimension_numbers = #tpu.dot_dimension_numbers<[1], [0], [0], [1], [0, 0, 1, 1], [], []>} : vector<8x32xbf16>, vector<32x128xbf16>, vector<8x128xf32> -> vector<8x128xf32>
    %176 = arith.addf %172, %175 : vector<8x128xf32>
    %177 = vector.extract_strided_slice %176 {offsets = [0, 0], sizes = [8, 96], strides = [1, 1]} : vector<8x128xf32> to vector<8x96xf32>
    %178 = arith.negf %177 : vector<8x96xf32>
    %179 = math.exp %178 : vector<8x96xf32>
    %cst_39 = arith.constant 1.000000e+00 : f32
    %180 = vector.broadcast %cst_39 : f32 to vector<8x96xf32>
    %181 = arith.addf %180, %179 : vector<8x96xf32>
    %182 = arith.divf %180, %181 : vector<8x96xf32>
    %183 = vector.extract_strided_slice %176 {offsets = [0, 96], sizes = [8, 32], strides = [1, 1]} : vector<8x128xf32> to vector<8x32xf32>
    %184 = math.tanh %183 : vector<8x32xf32>
    %185 = vector.extract_strided_slice %182 {offsets = [0, 0], sizes = [8, 32], strides = [1, 1]} : vector<8x96xf32> to vector<8x32xf32>
    %186 = vector.extract_strided_slice %182 {offsets = [0, 32], sizes = [8, 32], strides = [1, 1]} : vector<8x96xf32> to vector<8x32xf32>
    %187 = vector.extract_strided_slice %182 {offsets = [0, 64], sizes = [8, 32], strides = [1, 1]} : vector<8x96xf32> to vector<8x32xf32>
    %188 = arith.mulf %186, %167 : vector<8x32xf32>
    %189 = arith.mulf %185, %184 : vector<8x32xf32>
    %190 = arith.addf %188, %189 : vector<8x32xf32>
    %191 = math.tanh %190 : vector<8x32xf32>
    %192 = arith.mulf %187, %191 : vector<8x32xf32>
    %193 = arith.truncf %192 : vector<8x32xf32> to vector<8x32xbf16>
    %194 = vector.shape_cast %32 : vector<8x32xbf16> to vector<1x8x32xbf16>
    %195 = vector.shape_cast %55 : vector<8x32xbf16> to vector<1x8x32xbf16>
    %196 = vector.shape_cast %78 : vector<8x32xbf16> to vector<1x8x32xbf16>
    %197 = vector.shape_cast %101 : vector<8x32xbf16> to vector<1x8x32xbf16>
    %198 = vector.shape_cast %124 : vector<8x32xbf16> to vector<1x8x32xbf16>
    %199 = vector.shape_cast %147 : vector<8x32xbf16> to vector<1x8x32xbf16>
    %200 = vector.shape_cast %170 : vector<8x32xbf16> to vector<1x8x32xbf16>
    %201 = vector.shape_cast %193 : vector<8x32xbf16> to vector<1x8x32xbf16>
    %202 = tpu.concatenate %194, %195, %196, %197, %198, %199, %200, %201 in 0 : vector<1x8x32xbf16>, vector<1x8x32xbf16>, vector<1x8x32xbf16>, vector<1x8x32xbf16>, vector<1x8x32xbf16>, vector<1x8x32xbf16>, vector<1x8x32xbf16>, vector<1x8x32xbf16> -> vector<8x8x32xbf16>
    %203 = vector.shape_cast %202 : vector<8x8x32xbf16> to vector<64x32xbf16>
    %c0_40 = arith.constant 0 : index
    %c0_41 = arith.constant 0 : index
    %204 = vector.load %arg5[%c0_40, %c0_41] : memref<32x128xbf16, #tpu.memory_space<vmem>>, vector<32x128xbf16>
    %cst_42 = arith.constant dense<0.000000e+00> : vector<64x128xf32>
    %205 = tpu.matmul %203, %204, %cst_42 {dimension_numbers = #tpu.dot_dimension_numbers<[1], [0], [0], [1], [0, 0, 1, 1], [], []>} : vector<64x32xbf16>, vector<32x128xbf16>, vector<64x128xf32> -> vector<64x128xf32>
    %c0_43 = arith.constant 0 : index
    %c0_44 = arith.constant 0 : index
    %206 = vector.load %arg7[%c0_43, %c0_44] : memref<1x128xf32, #tpu.memory_space<vmem>>, vector<1x128xf32>
    %207 = vector.broadcast %206 : vector<1x128xf32> to vector<64x128xf32>
    %208 = arith.addf %205, %207 : vector<64x128xf32>
    %209 = vector.shape_cast %208 : vector<64x128xf32> to vector<8x8x128xf32>
    %cst_45 = arith.constant 0.000000e+00 : f32
    %210 = vector.broadcast %cst_45 : f32 to vector<8x32xf32>
    %cst_46 = arith.constant 0.000000e+00 : f32
    %211 = vector.broadcast %cst_46 : f32 to vector<8x32xf32>
    %212 = vector.extract_strided_slice %209 {offsets = [0, 0, 0], sizes = [1, 8, 128], strides = [1, 1, 1]} : vector<8x8x128xf32> to vector<1x8x128xf32>
    %213 = vector.shape_cast %212 : vector<1x8x128xf32> to vector<8x128xf32>
    %214 = arith.truncf %210 : vector<8x32xf32> to vector<8x32xbf16>
    %c0_47 = arith.constant 0 : index
    %c0_48 = arith.constant 0 : index
    %215 = vector.load %arg6[%c0_47, %c0_48] : memref<32x128xbf16, #tpu.memory_space<vmem>>, vector<32x128xbf16>
    %cst_49 = arith.constant dense<0.000000e+00> : vector<8x128xf32>
    %216 = tpu.matmul %214, %215, %cst_49 {dimension_numbers = #tpu.dot_dimension_numbers<[1], [0], [0], [1], [0, 0, 1, 1], [], []>} : vector<8x32xbf16>, vector<32x128xbf16>, vector<8x128xf32> -> vector<8x128xf32>
    %217 = arith.addf %213, %216 : vector<8x128xf32>
    %218 = vector.extract_strided_slice %217 {offsets = [0, 0], sizes = [8, 96], strides = [1, 1]} : vector<8x128xf32> to vector<8x96xf32>
    %219 = arith.negf %218 : vector<8x96xf32>
    %220 = math.exp %219 : vector<8x96xf32>
    %cst_50 = arith.constant 1.000000e+00 : f32
    %221 = vector.broadcast %cst_50 : f32 to vector<8x96xf32>
    %222 = arith.addf %221, %220 : vector<8x96xf32>
    %223 = arith.divf %221, %222 : vector<8x96xf32>
    %224 = vector.extract_strided_slice %217 {offsets = [0, 96], sizes = [8, 32], strides = [1, 1]} : vector<8x128xf32> to vector<8x32xf32>
    %225 = math.tanh %224 : vector<8x32xf32>
    %226 = vector.extract_strided_slice %223 {offsets = [0, 0], sizes = [8, 32], strides = [1, 1]} : vector<8x96xf32> to vector<8x32xf32>
    %227 = vector.extract_strided_slice %223 {offsets = [0, 32], sizes = [8, 32], strides = [1, 1]} : vector<8x96xf32> to vector<8x32xf32>
    %228 = vector.extract_strided_slice %223 {offsets = [0, 64], sizes = [8, 32], strides = [1, 1]} : vector<8x96xf32> to vector<8x32xf32>
    %229 = arith.mulf %227, %211 : vector<8x32xf32>
    %230 = arith.mulf %226, %225 : vector<8x32xf32>
    %231 = arith.addf %229, %230 : vector<8x32xf32>
    %232 = math.tanh %231 : vector<8x32xf32>
    %233 = arith.mulf %228, %232 : vector<8x32xf32>
    %234 = vector.extract_strided_slice %209 {offsets = [1, 0, 0], sizes = [1, 8, 128], strides = [1, 1, 1]} : vector<8x8x128xf32> to vector<1x8x128xf32>
    %235 = vector.shape_cast %234 : vector<1x8x128xf32> to vector<8x128xf32>
    %236 = arith.truncf %233 : vector<8x32xf32> to vector<8x32xbf16>
    %c0_51 = arith.constant 0 : index
    %c0_52 = arith.constant 0 : index
    %237 = vector.load %arg6[%c0_51, %c0_52] : memref<32x128xbf16, #tpu.memory_space<vmem>>, vector<32x128xbf16>
    %cst_53 = arith.constant dense<0.000000e+00> : vector<8x128xf32>
    %238 = tpu.matmul %236, %237, %cst_53 {dimension_numbers = #tpu.dot_dimension_numbers<[1], [0], [0], [1], [0, 0, 1, 1], [], []>} : vector<8x32xbf16>, vector<32x128xbf16>, vector<8x128xf32> -> vector<8x128xf32>
    %239 = arith.addf %235, %238 : vector<8x128xf32>
    %240 = vector.extract_strided_slice %239 {offsets = [0, 0], sizes = [8, 96], strides = [1, 1]} : vector<8x128xf32> to vector<8x96xf32>
    %241 = arith.negf %240 : vector<8x96xf32>
    %242 = math.exp %241 : vector<8x96xf32>
    %cst_54 = arith.constant 1.000000e+00 : f32
    %243 = vector.broadcast %cst_54 : f32 to vector<8x96xf32>
    %244 = arith.addf %243, %242 : vector<8x96xf32>
    %245 = arith.divf %243, %244 : vector<8x96xf32>
    %246 = vector.extract_strided_slice %239 {offsets = [0, 96], sizes = [8, 32], strides = [1, 1]} : vector<8x128xf32> to vector<8x32xf32>
    %247 = math.tanh %246 : vector<8x32xf32>
    %248 = vector.extract_strided_slice %245 {offsets = [0, 0], sizes = [8, 32], strides = [1, 1]} : vector<8x96xf32> to vector<8x32xf32>
    %249 = vector.extract_strided_slice %245 {offsets = [0, 32], sizes = [8, 32], strides = [1, 1]} : vector<8x96xf32> to vector<8x32xf32>
    %250 = vector.extract_strided_slice %245 {offsets = [0, 64], sizes = [8, 32], strides = [1, 1]} : vector<8x96xf32> to vector<8x32xf32>
    %251 = arith.mulf %249, %231 : vector<8x32xf32>
    %252 = arith.mulf %248, %247 : vector<8x32xf32>
    %253 = arith.addf %251, %252 : vector<8x32xf32>
    %254 = math.tanh %253 : vector<8x32xf32>
    %255 = arith.mulf %250, %254 : vector<8x32xf32>
    %256 = vector.extract_strided_slice %209 {offsets = [2, 0, 0], sizes = [1, 8, 128], strides = [1, 1, 1]} : vector<8x8x128xf32> to vector<1x8x128xf32>
    %257 = vector.shape_cast %256 : vector<1x8x128xf32> to vector<8x128xf32>
    %258 = arith.truncf %255 : vector<8x32xf32> to vector<8x32xbf16>
    %c0_55 = arith.constant 0 : index
    %c0_56 = arith.constant 0 : index
    %259 = vector.load %arg6[%c0_55, %c0_56] : memref<32x128xbf16, #tpu.memory_space<vmem>>, vector<32x128xbf16>
    %cst_57 = arith.constant dense<0.000000e+00> : vector<8x128xf32>
    %260 = tpu.matmul %258, %259, %cst_57 {dimension_numbers = #tpu.dot_dimension_numbers<[1], [0], [0], [1], [0, 0, 1, 1], [], []>} : vector<8x32xbf16>, vector<32x128xbf16>, vector<8x128xf32> -> vector<8x128xf32>
    %261 = arith.addf %257, %260 : vector<8x128xf32>
    %262 = vector.extract_strided_slice %261 {offsets = [0, 0], sizes = [8, 96], strides = [1, 1]} : vector<8x128xf32> to vector<8x96xf32>
    %263 = arith.negf %262 : vector<8x96xf32>
    %264 = math.exp %263 : vector<8x96xf32>
    %cst_58 = arith.constant 1.000000e+00 : f32
    %265 = vector.broadcast %cst_58 : f32 to vector<8x96xf32>
    %266 = arith.addf %265, %264 : vector<8x96xf32>
    %267 = arith.divf %265, %266 : vector<8x96xf32>
    %268 = vector.extract_strided_slice %261 {offsets = [0, 96], sizes = [8, 32], strides = [1, 1]} : vector<8x128xf32> to vector<8x32xf32>
    %269 = math.tanh %268 : vector<8x32xf32>
    %270 = vector.extract_strided_slice %267 {offsets = [0, 0], sizes = [8, 32], strides = [1, 1]} : vector<8x96xf32> to vector<8x32xf32>
    %271 = vector.extract_strided_slice %267 {offsets = [0, 32], sizes = [8, 32], strides = [1, 1]} : vector<8x96xf32> to vector<8x32xf32>
    %272 = vector.extract_strided_slice %267 {offsets = [0, 64], sizes = [8, 32], strides = [1, 1]} : vector<8x96xf32> to vector<8x32xf32>
    %273 = arith.mulf %271, %253 : vector<8x32xf32>
    %274 = arith.mulf %270, %269 : vector<8x32xf32>
    %275 = arith.addf %273, %274 : vector<8x32xf32>
    %276 = math.tanh %275 : vector<8x32xf32>
    %277 = arith.mulf %272, %276 : vector<8x32xf32>
    %278 = vector.extract_strided_slice %209 {offsets = [3, 0, 0], sizes = [1, 8, 128], strides = [1, 1, 1]} : vector<8x8x128xf32> to vector<1x8x128xf32>
    %279 = vector.shape_cast %278 : vector<1x8x128xf32> to vector<8x128xf32>
    %280 = arith.truncf %277 : vector<8x32xf32> to vector<8x32xbf16>
    %c0_59 = arith.constant 0 : index
    %c0_60 = arith.constant 0 : index
    %281 = vector.load %arg6[%c0_59, %c0_60] : memref<32x128xbf16, #tpu.memory_space<vmem>>, vector<32x128xbf16>
    %cst_61 = arith.constant dense<0.000000e+00> : vector<8x128xf32>
    %282 = tpu.matmul %280, %281, %cst_61 {dimension_numbers = #tpu.dot_dimension_numbers<[1], [0], [0], [1], [0, 0, 1, 1], [], []>} : vector<8x32xbf16>, vector<32x128xbf16>, vector<8x128xf32> -> vector<8x128xf32>
    %283 = arith.addf %279, %282 : vector<8x128xf32>
    %284 = vector.extract_strided_slice %283 {offsets = [0, 0], sizes = [8, 96], strides = [1, 1]} : vector<8x128xf32> to vector<8x96xf32>
    %285 = arith.negf %284 : vector<8x96xf32>
    %286 = math.exp %285 : vector<8x96xf32>
    %cst_62 = arith.constant 1.000000e+00 : f32
    %287 = vector.broadcast %cst_62 : f32 to vector<8x96xf32>
    %288 = arith.addf %287, %286 : vector<8x96xf32>
    %289 = arith.divf %287, %288 : vector<8x96xf32>
    %290 = vector.extract_strided_slice %283 {offsets = [0, 96], sizes = [8, 32], strides = [1, 1]} : vector<8x128xf32> to vector<8x32xf32>
    %291 = math.tanh %290 : vector<8x32xf32>
    %292 = vector.extract_strided_slice %289 {offsets = [0, 0], sizes = [8, 32], strides = [1, 1]} : vector<8x96xf32> to vector<8x32xf32>
    %293 = vector.extract_strided_slice %289 {offsets = [0, 32], sizes = [8, 32], strides = [1, 1]} : vector<8x96xf32> to vector<8x32xf32>
    %294 = vector.extract_strided_slice %289 {offsets = [0, 64], sizes = [8, 32], strides = [1, 1]} : vector<8x96xf32> to vector<8x32xf32>
    %295 = arith.mulf %293, %275 : vector<8x32xf32>
    %296 = arith.mulf %292, %291 : vector<8x32xf32>
    %297 = arith.addf %295, %296 : vector<8x32xf32>
    %298 = math.tanh %297 : vector<8x32xf32>
    %299 = arith.mulf %294, %298 : vector<8x32xf32>
    %300 = vector.extract_strided_slice %209 {offsets = [4, 0, 0], sizes = [1, 8, 128], strides = [1, 1, 1]} : vector<8x8x128xf32> to vector<1x8x128xf32>
    %301 = vector.shape_cast %300 : vector<1x8x128xf32> to vector<8x128xf32>
    %302 = arith.truncf %299 : vector<8x32xf32> to vector<8x32xbf16>
    %c0_63 = arith.constant 0 : index
    %c0_64 = arith.constant 0 : index
    %303 = vector.load %arg6[%c0_63, %c0_64] : memref<32x128xbf16, #tpu.memory_space<vmem>>, vector<32x128xbf16>
    %cst_65 = arith.constant dense<0.000000e+00> : vector<8x128xf32>
    %304 = tpu.matmul %302, %303, %cst_65 {dimension_numbers = #tpu.dot_dimension_numbers<[1], [0], [0], [1], [0, 0, 1, 1], [], []>} : vector<8x32xbf16>, vector<32x128xbf16>, vector<8x128xf32> -> vector<8x128xf32>
    %305 = arith.addf %301, %304 : vector<8x128xf32>
    %306 = vector.extract_strided_slice %305 {offsets = [0, 0], sizes = [8, 96], strides = [1, 1]} : vector<8x128xf32> to vector<8x96xf32>
    %307 = arith.negf %306 : vector<8x96xf32>
    %308 = math.exp %307 : vector<8x96xf32>
    %cst_66 = arith.constant 1.000000e+00 : f32
    %309 = vector.broadcast %cst_66 : f32 to vector<8x96xf32>
    %310 = arith.addf %309, %308 : vector<8x96xf32>
    %311 = arith.divf %309, %310 : vector<8x96xf32>
    %312 = vector.extract_strided_slice %305 {offsets = [0, 96], sizes = [8, 32], strides = [1, 1]} : vector<8x128xf32> to vector<8x32xf32>
    %313 = math.tanh %312 : vector<8x32xf32>
    %314 = vector.extract_strided_slice %311 {offsets = [0, 0], sizes = [8, 32], strides = [1, 1]} : vector<8x96xf32> to vector<8x32xf32>
    %315 = vector.extract_strided_slice %311 {offsets = [0, 32], sizes = [8, 32], strides = [1, 1]} : vector<8x96xf32> to vector<8x32xf32>
    %316 = vector.extract_strided_slice %311 {offsets = [0, 64], sizes = [8, 32], strides = [1, 1]} : vector<8x96xf32> to vector<8x32xf32>
    %317 = arith.mulf %315, %297 : vector<8x32xf32>
    %318 = arith.mulf %314, %313 : vector<8x32xf32>
    %319 = arith.addf %317, %318 : vector<8x32xf32>
    %320 = math.tanh %319 : vector<8x32xf32>
    %321 = arith.mulf %316, %320 : vector<8x32xf32>
    %322 = vector.extract_strided_slice %209 {offsets = [5, 0, 0], sizes = [1, 8, 128], strides = [1, 1, 1]} : vector<8x8x128xf32> to vector<1x8x128xf32>
    %323 = vector.shape_cast %322 : vector<1x8x128xf32> to vector<8x128xf32>
    %324 = arith.truncf %321 : vector<8x32xf32> to vector<8x32xbf16>
    %c0_67 = arith.constant 0 : index
    %c0_68 = arith.constant 0 : index
    %325 = vector.load %arg6[%c0_67, %c0_68] : memref<32x128xbf16, #tpu.memory_space<vmem>>, vector<32x128xbf16>
    %cst_69 = arith.constant dense<0.000000e+00> : vector<8x128xf32>
    %326 = tpu.matmul %324, %325, %cst_69 {dimension_numbers = #tpu.dot_dimension_numbers<[1], [0], [0], [1], [0, 0, 1, 1], [], []>} : vector<8x32xbf16>, vector<32x128xbf16>, vector<8x128xf32> -> vector<8x128xf32>
    %327 = arith.addf %323, %326 : vector<8x128xf32>
    %328 = vector.extract_strided_slice %327 {offsets = [0, 0], sizes = [8, 96], strides = [1, 1]} : vector<8x128xf32> to vector<8x96xf32>
    %329 = arith.negf %328 : vector<8x96xf32>
    %330 = math.exp %329 : vector<8x96xf32>
    %cst_70 = arith.constant 1.000000e+00 : f32
    %331 = vector.broadcast %cst_70 : f32 to vector<8x96xf32>
    %332 = arith.addf %331, %330 : vector<8x96xf32>
    %333 = arith.divf %331, %332 : vector<8x96xf32>
    %334 = vector.extract_strided_slice %327 {offsets = [0, 96], sizes = [8, 32], strides = [1, 1]} : vector<8x128xf32> to vector<8x32xf32>
    %335 = math.tanh %334 : vector<8x32xf32>
    %336 = vector.extract_strided_slice %333 {offsets = [0, 0], sizes = [8, 32], strides = [1, 1]} : vector<8x96xf32> to vector<8x32xf32>
    %337 = vector.extract_strided_slice %333 {offsets = [0, 32], sizes = [8, 32], strides = [1, 1]} : vector<8x96xf32> to vector<8x32xf32>
    %338 = vector.extract_strided_slice %333 {offsets = [0, 64], sizes = [8, 32], strides = [1, 1]} : vector<8x96xf32> to vector<8x32xf32>
    %339 = arith.mulf %337, %319 : vector<8x32xf32>
    %340 = arith.mulf %336, %335 : vector<8x32xf32>
    %341 = arith.addf %339, %340 : vector<8x32xf32>
    %342 = math.tanh %341 : vector<8x32xf32>
    %343 = arith.mulf %338, %342 : vector<8x32xf32>
    %344 = vector.extract_strided_slice %209 {offsets = [6, 0, 0], sizes = [1, 8, 128], strides = [1, 1, 1]} : vector<8x8x128xf32> to vector<1x8x128xf32>
    %345 = vector.shape_cast %344 : vector<1x8x128xf32> to vector<8x128xf32>
    %346 = arith.truncf %343 : vector<8x32xf32> to vector<8x32xbf16>
    %c0_71 = arith.constant 0 : index
    %c0_72 = arith.constant 0 : index
    %347 = vector.load %arg6[%c0_71, %c0_72] : memref<32x128xbf16, #tpu.memory_space<vmem>>, vector<32x128xbf16>
    %cst_73 = arith.constant dense<0.000000e+00> : vector<8x128xf32>
    %348 = tpu.matmul %346, %347, %cst_73 {dimension_numbers = #tpu.dot_dimension_numbers<[1], [0], [0], [1], [0, 0, 1, 1], [], []>} : vector<8x32xbf16>, vector<32x128xbf16>, vector<8x128xf32> -> vector<8x128xf32>
    %349 = arith.addf %345, %348 : vector<8x128xf32>
    %350 = vector.extract_strided_slice %349 {offsets = [0, 0], sizes = [8, 96], strides = [1, 1]} : vector<8x128xf32> to vector<8x96xf32>
    %351 = arith.negf %350 : vector<8x96xf32>
    %352 = math.exp %351 : vector<8x96xf32>
    %cst_74 = arith.constant 1.000000e+00 : f32
    %353 = vector.broadcast %cst_74 : f32 to vector<8x96xf32>
    %354 = arith.addf %353, %352 : vector<8x96xf32>
    %355 = arith.divf %353, %354 : vector<8x96xf32>
    %356 = vector.extract_strided_slice %349 {offsets = [0, 96], sizes = [8, 32], strides = [1, 1]} : vector<8x128xf32> to vector<8x32xf32>
    %357 = math.tanh %356 : vector<8x32xf32>
    %358 = vector.extract_strided_slice %355 {offsets = [0, 0], sizes = [8, 32], strides = [1, 1]} : vector<8x96xf32> to vector<8x32xf32>
    %359 = vector.extract_strided_slice %355 {offsets = [0, 32], sizes = [8, 32], strides = [1, 1]} : vector<8x96xf32> to vector<8x32xf32>
    %360 = vector.extract_strided_slice %355 {offsets = [0, 64], sizes = [8, 32], strides = [1, 1]} : vector<8x96xf32> to vector<8x32xf32>
    %361 = arith.mulf %359, %341 : vector<8x32xf32>
    %362 = arith.mulf %358, %357 : vector<8x32xf32>
    %363 = arith.addf %361, %362 : vector<8x32xf32>
    %364 = math.tanh %363 : vector<8x32xf32>
    %365 = arith.mulf %360, %364 : vector<8x32xf32>
    %366 = vector.extract_strided_slice %209 {offsets = [7, 0, 0], sizes = [1, 8, 128], strides = [1, 1, 1]} : vector<8x8x128xf32> to vector<1x8x128xf32>
    %367 = vector.shape_cast %366 : vector<1x8x128xf32> to vector<8x128xf32>
    %368 = arith.truncf %365 : vector<8x32xf32> to vector<8x32xbf16>
    %c0_75 = arith.constant 0 : index
    %c0_76 = arith.constant 0 : index
    %369 = vector.load %arg6[%c0_75, %c0_76] : memref<32x128xbf16, #tpu.memory_space<vmem>>, vector<32x128xbf16>
    %cst_77 = arith.constant dense<0.000000e+00> : vector<8x128xf32>
    %370 = tpu.matmul %368, %369, %cst_77 {dimension_numbers = #tpu.dot_dimension_numbers<[1], [0], [0], [1], [0, 0, 1, 1], [], []>} : vector<8x32xbf16>, vector<32x128xbf16>, vector<8x128xf32> -> vector<8x128xf32>
    %371 = arith.addf %367, %370 : vector<8x128xf32>
    %372 = vector.extract_strided_slice %371 {offsets = [0, 0], sizes = [8, 96], strides = [1, 1]} : vector<8x128xf32> to vector<8x96xf32>
    %373 = arith.negf %372 : vector<8x96xf32>
    %374 = math.exp %373 : vector<8x96xf32>
    %cst_78 = arith.constant 1.000000e+00 : f32
    %375 = vector.broadcast %cst_78 : f32 to vector<8x96xf32>
    %376 = arith.addf %375, %374 : vector<8x96xf32>
    %377 = arith.divf %375, %376 : vector<8x96xf32>
    %378 = vector.extract_strided_slice %371 {offsets = [0, 96], sizes = [8, 32], strides = [1, 1]} : vector<8x128xf32> to vector<8x32xf32>
    %379 = math.tanh %378 : vector<8x32xf32>
    %380 = vector.extract_strided_slice %377 {offsets = [0, 0], sizes = [8, 32], strides = [1, 1]} : vector<8x96xf32> to vector<8x32xf32>
    %381 = vector.extract_strided_slice %377 {offsets = [0, 32], sizes = [8, 32], strides = [1, 1]} : vector<8x96xf32> to vector<8x32xf32>
    %382 = vector.extract_strided_slice %377 {offsets = [0, 64], sizes = [8, 32], strides = [1, 1]} : vector<8x96xf32> to vector<8x32xf32>
    %383 = arith.mulf %381, %363 : vector<8x32xf32>
    %384 = arith.mulf %380, %379 : vector<8x32xf32>
    %385 = arith.addf %383, %384 : vector<8x32xf32>
    %386 = math.tanh %385 : vector<8x32xf32>
    %387 = arith.mulf %382, %386 : vector<8x32xf32>
    %388 = arith.truncf %387 : vector<8x32xf32> to vector<8x32xbf16>
    %c0_79 = arith.constant 0 : index
    %c0_80 = arith.constant 0 : index
    %389 = vector.load %arg8[%c0_79, %c0_80] : memref<32x8xbf16, #tpu.memory_space<vmem>>, vector<32x8xbf16>
    %cst_81 = arith.constant dense<0.000000e+00> : vector<8x8xf32>
    %390 = tpu.matmul %388, %389, %cst_81 {dimension_numbers = #tpu.dot_dimension_numbers<[1], [0], [0], [1], [0, 0, 1, 1], [], []>} : vector<8x32xbf16>, vector<32x8xbf16>, vector<8x8xf32> -> vector<8x8xf32>
    %c0_82 = arith.constant 0 : index
    %c0_83 = arith.constant 0 : index
    %391 = vector.load %arg9[%c0_82, %c0_83] : memref<1x8xf32, #tpu.memory_space<vmem>>, vector<1x8xf32>
    %392 = vector.broadcast %391 : vector<1x8xf32> to vector<8x8xf32>
    %393 = arith.addf %390, %392 : vector<8x8xf32>
    %cst_84 = arith.constant dense<0xFF800000> : vector<8xf32>
    %394 = vector.multi_reduction <maximumf>, %393, %cst_84 [1] : vector<8x8xf32> to vector<8xf32>
    %395 = vector.shape_cast %394 : vector<8xf32> to vector<8x1xf32>
    %396 = vector.broadcast %395 : vector<8x1xf32> to vector<8x8xf32>
    %397 = arith.subf %393, %396 : vector<8x8xf32>
    %398 = math.exp %397 : vector<8x8xf32>
    %cst_85 = arith.constant dense<0.000000e+00> : vector<8xf32>
    %399 = vector.multi_reduction <add>, %398, %cst_85 [1] : vector<8x8xf32> to vector<8xf32>
    %400 = vector.shape_cast %399 : vector<8xf32> to vector<8x1xf32>
    %401 = vector.broadcast %400 : vector<8x1xf32> to vector<8x8xf32>
    %402 = arith.divf %398, %401 : vector<8x8xf32>
    %c0_86 = arith.constant 0 : index
    %c0_87 = arith.constant 0 : index
    %403 = vector.load %arg10[%c0_86, %c0_87] : memref<8x8xf32, #tpu.memory_space<vmem>>, vector<8x8xf32>
    tpu.vector_store %arg10[%c0_86, %c0_87], %402 {strides = array<i32>} : memref<8x8xf32, #tpu.memory_space<vmem>>, vector<8x8xf32>,
    return
  }
  func.func @transform_0(%arg0: i32) -> (i32, i32, i32) {
    %c0_i32 = arith.constant 0 : i32
    %c0_i32_0 = arith.constant 0 : i32
    %c0_i32_1 = arith.constant 0 : i32
    %c0_i32_2 = arith.constant 0 : i32
    return %c0_i32, %c0_i32_0, %c0_i32_1 : i32, i32, i32
  }
  func.func @transform_1(%arg0: i32) -> (i32, i32) {
    %c0_i32 = arith.constant 0 : i32
    %c0_i32_0 = arith.constant 0 : i32
    %c0_i32_1 = arith.constant 0 : i32
    return %c0_i32, %c0_i32_0 : i32, i32
  }
  func.func @transform_2(%arg0: i32) -> (i32, i32) {
    %c0_i32 = arith.constant 0 : i32
    %c0_i32_0 = arith.constant 0 : i32
    %c0_i32_1 = arith.constant 0 : i32
    return %c0_i32, %c0_i32_0 : i32, i32
  }
  func.func @transform_3(%arg0: i32) -> (i32, i32) {
    %c0_i32 = arith.constant 0 : i32
    %c0_i32_0 = arith.constant 0 : i32
    %c0_i32_1 = arith.constant 0 : i32
    return %c0_i32, %c0_i32_0 : i32, i32
  }
  func.func @transform_4(%arg0: i32) -> (i32, i32) {
    %c0_i32 = arith.constant 0 : i32
    %c0_i32_0 = arith.constant 0 : i32
    %c0_i32_1 = arith.constant 0 : i32
    return %c0_i32, %c0_i32_0 : i32, i32
  }
  func.func @transform_5(%arg0: i32) -> (i32, i32) {
    %c0_i32 = arith.constant 0 : i32
    %c0_i32_0 = arith.constant 0 : i32
    %c0_i32_1 = arith.constant 0 : i32
    return %c0_i32, %c0_i32_0 : i32, i32
  }
  func.func @transform_6(%arg0: i32) -> (i32, i32) {
    %c0_i32 = arith.constant 0 : i32
    %c0_i32_0 = arith.constant 0 : i32
    %c0_i32_1 = arith.constant 0 : i32
    return %c0_i32, %c0_i32_0 : i32, i32
  }
  func.func @transform_7(%arg0: i32) -> (i32, i32) {
    %c0_i32 = arith.constant 0 : i32
    %c0_i32_0 = arith.constant 0 : i32
    %c0_i32_1 = arith.constant 0 : i32
    return %c0_i32, %c0_i32_0 : i32, i32
  }
  func.func @transform_8(%arg0: i32) -> (i32, i32) {
    %c0_i32 = arith.constant 0 : i32
    %c0_i32_0 = arith.constant 0 : i32
    %c0_i32_1 = arith.constant 0 : i32
    return %c0_i32, %c0_i32_0 : i32, i32
  }
  func.func @transform_9(%arg0: i32) -> (i32, i32) {
    %c0_i32 = arith.constant 0 : i32
    %c0_i32_0 = arith.constant 0 : i32
    %c0_i32_1 = arith.constant 0 : i32
    return %c0_i32, %c0_i32_0 : i32, i32
  }
}

</mosaic_0001>

<llo_original>
// kernel: lstm_classifier_forward_impl.1
$region0: #{lstm_classifier_forward_impl.1}
  #allocation0 [shape = 'u32[]', space=smem, size = 0x4, offset = 0x4, fixed_abs, tag = 'smem constant byte address 0x4 - core index']
  #allocation1 [shape = 'u32[72,128]{1,0:T(1,128)}', space=vmem, size = 0x9000, scoped, tag = 'internal scratch']
  %s0 = inlined_call_operand.vmem [shape: bf16[8,8,16], index: 0, kind: input, shape index: {}]
  %s1 = inlined_call_operand.vmem [shape: bf16[16,128], index: 1, kind: input, shape index: {}]
  %s2 = inlined_call_operand.vmem [shape: bf16[32,128], index: 2, kind: input, shape index: {}]
  %s3 = inlined_call_operand.vmem [shape: f32[1,128], index: 3, kind: input, shape index: {}]
  %s4 = inlined_call_operand.vmem [shape: bf16[32,128], index: 4, kind: input, shape index: {}]
  %s5 = inlined_call_operand.vmem [shape: bf16[32,128], index: 5, kind: input, shape index: {}]
  %s6 = inlined_call_operand.vmem [shape: f32[1,128], index: 6, kind: input, shape index: {}]
  %s7 = inlined_call_operand.vmem [shape: bf16[32,8], index: 7, kind: input, shape index: {}]
  %s8 = inlined_call_operand.vmem [shape: f32[1,8], index: 8, kind: input, shape index: {}]
  %s9 = inlined_call_operand.vmem [shape: f32[8,8], index: 9, kind: output, shape index: {}]
  %s10 = sld [smem:[#allocation0]]
  $region46: #{lstm_classifier_forward_impl.1} parent=0
    _
  %s12 = ssub.s32 1, %s10
  %s13 = scalar_select 0, %s12, %s10
  // Predicated region
  $region2: #{lstm_classifier_forward_impl.1} parent=0 // pred_check
    _
  $region3: #{lstm_classifier_forward_impl.1} parent=0 // pred_check_branch
    %15 = sbr.rel (0) target = $region5
  $region4: #{lstm_classifier_forward_impl.1} parent=0 // pred_region
    _
  $region5: #{lstm_classifier_forward_impl.1} parent=0 // pred_fallthru
    _
  // Predicated region
  $region6: #{lstm_classifier_forward_impl.1} parent=0 // pred_check
    _
  $region7: #{lstm_classifier_forward_impl.1} parent=0 // pred_check_branch
    %17 = sbr.rel (0) target = $region9
  $region8: #{lstm_classifier_forward_impl.1} parent=0 // pred_region
    _
  $region9: #{lstm_classifier_forward_impl.1} parent=0 // pred_fallthru
    _
  // Predicated region
  $region10: #{lstm_classifier_forward_impl.1} parent=0 // pred_check
    _
  $region11: #{lstm_classifier_forward_impl.1} parent=0 // pred_check_branch
    %19 = sbr.rel (0) target = $region13
  $region12: #{lstm_classifier_forward_impl.1} parent=0 // pred_region
    _
  $region13: #{lstm_classifier_forward_impl.1} parent=0 // pred_fallthru
    _
  // Predicated region
  $region14: #{lstm_classifier_forward_impl.1} parent=0 // pred_check
    _
  $region15: #{lstm_classifier_forward_impl.1} parent=0 // pred_check_branch
    %21 = sbr.rel (0) target = $region17
  $region16: #{lstm_classifier_forward_impl.1} parent=0 // pred_region
    _
  $region17: #{lstm_classifier_forward_impl.1} parent=0 // pred_fallthru
    _
  // Predicated region
  $region18: #{lstm_classifier_forward_impl.1} parent=0 // pred_check
    _
  $region19: #{lstm_classifier_forward_impl.1} parent=0 // pred_check_branch
    %23 = sbr.rel (0) target = $region21
  $region20: #{lstm_classifier_forward_impl.1} parent=0 // pred_region
    _
  $region21: #{lstm_classifier_forward_impl.1} parent=0 // pred_fallthru
    _
  // Predicated region
  $region22: #{lstm_classifier_forward_impl.1} parent=0 // pred_check
    _
  $region23: #{lstm_classifier_forward_impl.1} parent=0 // pred_check_branch
    %25 = sbr.rel (0) target = $region25
  $region24: #{lstm_classifier_forward_impl.1} parent=0 // pred_region
    _
  $region25: #{lstm_classifier_forward_impl.1} parent=0 // pred_fallthru
    _
  // Predicated region
  $region26: #{lstm_classifier_forward_impl.1} parent=0 // pred_check
    _
  $region27: #{lstm_classifier_forward_impl.1} parent=0 // pred_check_branch
    %27 = sbr.rel (0) target = $region29
  $region28: #{lstm_classifier_forward_impl.1} parent=0 // pred_region
    _
  $region29: #{lstm_classifier_forward_impl.1} parent=0 // pred_fallthru
    _
  // Predicated region
  $region30: #{lstm_classifier_forward_impl.1} parent=0 // pred_check
    _
  $region31: #{lstm_classifier_forward_impl.1} parent=0 // pred_check_branch
    %29 = sbr.rel (0) target = $region33
  $region32: #{lstm_classifier_forward_impl.1} parent=0 // pred_region
    _
  $region33: #{lstm_classifier_forward_impl.1} parent=0 // pred_fallthru
    _
  // Predicated region
  $region34: #{lstm_classifier_forward_impl.1} parent=0 // pred_check
    _
  $region35: #{lstm_classifier_forward_impl.1} parent=0 // pred_check_branch
    %31 = sbr.rel (0) target = $region37
  $region36: #{lstm_classifier_forward_impl.1} parent=0 // pred_region
    _
  $region37: #{lstm_classifier_forward_impl.1} parent=0 // pred_fallthru
    _
  %v33 = vld [vmem:[%s0] sm:$0xf]
  %v34 = vld [vmem:[%s0 + $0x4] sm:$0xf]
  %v35 = vld [vmem:[%s0 + $0x8] sm:$0xf]
  %v36 = vld [vmem:[%s0 + $0xc] sm:$0xf]
  %v37 = vld [vmem:[%s0 + $0x10] sm:$0xf]
  %v38 = vld [vmem:[%s0 + $0x14] sm:$0xf]
  %v39 = vld [vmem:[%s0 + $0x18] sm:$0xf]
  %v40 = vld [vmem:[%s0 + $0x1c] sm:$0xf]
  %v41 = vld [vmem:[%s1] sm:$0xf]
  %v42 = vld [vmem:[%s1 + $0x4] sm:$0xf]
  %v43 = vld [vmem:[%s3] sm:$0x1]
  %v45 = vperm.slane %v43, 0
  %v55 = vunpack.c.l.b16 %v33
  %v56 = vunpack.c.l.b16 %v34
  %v57 = vunpack.c.l.b16 %v35
  %v58 = vunpack.c.l.b16 %v36
  %v59 = vunpack.c.l.b16 %v37
  %v60 = vunpack.c.l.b16 %v38
  %v61 = vunpack.c.l.b16 %v39
  %v62 = vunpack.c.l.b16 %v40
  %v63 = vpack.c.b16 %v56, %v55
  %v64 = vpack.c.b16 %v58, %v57
  %v65 = vpack.c.b16 %v60, %v59
  %v66 = vpack.c.b16 %v62, %v61
  %v69 = vunpack.c.l.b16 %v41
  %v70 = vunpack.c.l.b16 %v42
  %v71 = vpack.c.b16 %v70, %v69
  %vm73 = vcmask 130048
  %v75 = vsel %vm73, %v63, 0
  %v78 = vsel %vm73, %v64, 0
  %v81 = vsel %vm73, %v65, 0
  %v84 = vsel %vm73, %v66, 0
  %86 = vmatpush.bf16.msra.mxu0 0
  %87 = vmatpush.bf16.msra.mxu0 0
  %88 = vmatpush.bf16.msra.mxu0 0
  %89 = vmatpush.bf16.msra.mxu0 0
  %90 = vmatpush.bf16.msra.mxu0 0
  %91 = vmatpush.bf16.msra.mxu0 0
  %92 = vmatpush.bf16.msra.mxu0 0
  %93 = vmatpush.bf16.msra.mxu0 %v71
  %94 = vmatmul.bf16.gmra.mxu0 %v75
  %v95 = vpop.f32.mrf.mxu0
  %v96 = vadd.f32 %v45, %v95
  %v97 = vpop.f32.mrf.mxu0
  %v98 = vadd.f32 %v45, %v97
  %99 = vmatmul.bf16.gmra.mxu0 %v78
  %v100 = vpop.f32.mrf.mxu0
  %v101 = vadd.f32 %v45, %v100
  %v102 = vpop.f32.mrf.mxu0
  %v103 = vadd.f32 %v45, %v102
  %104 = vmatmul.bf16.gmra.mxu0 %v81
  %v105 = vpop.f32.mrf.mxu0
  %v106 = vadd.f32 %v45, %v105
  %v107 = vpop.f32.mrf.mxu0
  %v108 = vadd.f32 %v45, %v107
  %109 = vmatmul.bf16.gmra.mxu0 %v84
  %v110 = vpop.f32.mrf.mxu0
  %v111 = vadd.f32 %v45, %v110
  %v112 = vpop.f32.mrf.mxu0
  %v113 = vadd.f32 %v45, %v112
  %114 = vdwg.mxu0
  %v115 = vld [vmem:[%s2] sm:$0xf]
  %v116 = vld [vmem:[%s2 + $0x4] sm:$0xf]
  %v117 = vld [vmem:[%s2 + $0x8] sm:$0xf]
  %v118 = vld [vmem:[%s2 + $0xc] sm:$0xf]
  %v123 = vunpack.c.l.b16 %v115
  %v124 = vunpack.c.l.b16 %v116
  %v125 = vunpack.c.l.b16 %v117
  %v126 = vunpack.c.l.b16 %v118
  %v127 = vpack.c.b16 %v124, %v123
  %v128 = vpack.c.b16 %v126, %v125
  %vm131 = vcmask 261120
  %v133 = vsel %vm131, 0, 0
  %135 = vmatpush.bf16.msra.mxu0 0
  %136 = vmatpush.bf16.msra.mxu0 0
  %137 = vmatpush.bf16.msra.mxu0 0
  %138 = vmatpush.bf16.msra.mxu0 0
  %139 = vmatpush.bf16.msra.mxu0 0
  %140 = vmatpush.bf16.msra.mxu0 0
  %141 = vmatpush.bf16.msra.mxu0 %v128
  %142 = vmatpush.bf16.msra.mxu0 %v127
  %143 = vmatmul.bf16.gmra.mxu0 %v133
  %v144 = vpop.f32.mrf.mxu0
  %v145 = vadd.f32 0.0, %v144
  %v146 = vpop.f32.mrf.mxu0
  %147 = vdwg.mxu0
  %v148 = vadd.f32 %v96, %v145
  %v149 = vxor.u32 %v148, 2147483648
  %v150 = vmul.f32 %v149, 1.442695
  %v151 = vpow.pop %v150
  %v152 = vadd.f32 %v151, 1.0
  %v153 = vrcp.pop %v152
  %v154 = vmul.f32 %v152, %v153
  %v155 = vsub.f32 1.0, %v154
  %v156 = vmul.f32 %v153, %v155
  %v157 = vadd.f32 %v153, %v156
  %vm158 = vweird.f32 %v152
  %vm159 = vweird.f32 %v153
  %vm160 = vmor %vm158, %vm159
  %v161 = vsel %vm160, %v153, %v157
  %v162 = vand.u32 2147483647, %v152
  %vm163 = vcmp.eq.f32.partialorder %v162, 8.507059e+37
  %v164 = vand.u32 %v152, 2147483648
  %v165 = vor.u32 1.1754944e-38, %v164
  %v166 = vsel %vm163, %v165, %v161
  %v167 = vmul.f32 1.0, %v166
  %v168 = vtanh.pop %v148
  %v169 = vmul.f32 %v167, 0.0
  %171 = vrot.lane.b32.xlu0 %v168, 32
  %v172 = vpop.permute.xlu0 %171
  %v174 = vmul.f32 %v167, %v172
  %176 = vrot.lane.b32.xlu0 %v174, 32
  %v177 = vpop.permute.xlu0 %176
  %v179 = vadd.f32 %v169, %v177
  %v180 = vtanh.pop %v179
  %182 = vrot.lane.b32.xlu0 %v180, 32
  %v183 = vpop.permute.xlu0 %182
  %v185 = vmul.f32 %v167, %v183
  %v186 = vpack.c.bf16 %v185, %v185
  %v188 = vunpack.c.l.b16 %v186
  %v189 = vpack.c.b16 %v188, %v188
  %190 = vrot.lane.b32.xlu0 %v189, 64
  %v191 = vpop.permute.xlu0 %190
  %v193 = vsel %vm131, %v191, 0
  %195 = vmatpush.bf16.msra.mxu0 0
  %196 = vmatpush.bf16.msra.mxu0 0
  %197 = vmatpush.bf16.msra.mxu0 0
  %198 = vmatpush.bf16.msra.mxu0 0
  %199 = vmatpush.bf16.msra.mxu0 0
  %200 = vmatpush.bf16.msra.mxu0 0
  %201 = vmatpush.bf16.msra.mxu0 %v128
  %202 = vmatpush.bf16.msra.mxu0 %v127
  %203 = vmatmul.bf16.gmra.mxu0 %v193
  %v204 = vpop.f32.mrf.mxu0
  %v205 = vadd.f32 0.0, %v204
  %v206 = vpop.f32.mrf.mxu0
  %207 = vdwg.mxu0
  %v208 = vadd.f32 %v98, %v205
  %v209 = vxor.u32 %v208, 2147483648
  %v210 = vmul.f32 %v209, 1.442695
  %v211 = vpow.pop %v210
  %v212 = vadd.f32 %v211, 1.0
  %v213 = vrcp.pop %v212
  %v214 = vmul.f32 %v212, %v213
  %v215 = vsub.f32 1.0, %v214
  %v216 = vmul.f32 %v213, %v215
  %v217 = vadd.f32 %v213, %v216
  %vm218 = vweird.f32 %v212
  %vm219 = vweird.f32 %v213
  %vm220 = vmor %vm218, %vm219
  %v221 = vsel %vm220, %v213, %v217
  %v222 = vand.u32 2147483647, %v212
  %vm223 = vcmp.eq.f32.partialorder %v222, 8.507059e+37
  %v224 = vand.u32 %v212, 2147483648
  %v225 = vor.u32 1.1754944e-38, %v224
  %v226 = vsel %vm223, %v225, %v221
  %v227 = vmul.f32 1.0, %v226
  %v228 = vtanh.pop %v208
  %v229 = vmul.f32 %v227, %v179
  %231 = vrot.lane.b32.xlu0 %v228, 32
  %v232 = vpop.permute.xlu0 %231
  %v234 = vmul.f32 %v227, %v232
  %236 = vrot.lane.b32.xlu0 %v234, 32
  %v237 = vpop.permute.xlu0 %236
  %v239 = vadd.f32 %v229, %v237
  %v240 = vtanh.pop %v239
  %242 = vrot.lane.b32.xlu0 %v240, 32
  %v243 = vpop.permute.xlu0 %242
  %v245 = vmul.f32 %v227, %v243
  %v246 = vpack.c.bf16 %v245, %v245
  %v248 = vunpack.c.l.b16 %v246
  %v249 = vpack.c.b16 %v248, %v248
  %250 = vrot.lane.b32.xlu0 %v249, 64
  %v251 = vpop.permute.xlu0 %250
  %v253 = vsel %vm131, %v251, 0
  %255 = vmatpush.bf16.msra.mxu0 0
  %256 = vmatpush.bf16.msra.mxu0 0
  %257 = vmatpush.bf16.msra.mxu0 0
  %258 = vmatpush.bf16.msra.mxu0 0
  %259 = vmatpush.bf16.msra.mxu0 0
  %260 = vmatpush.bf16.msra.mxu0 0
  %261 = vmatpush.bf16.msra.mxu0 %v128
  %262 = vmatpush.bf16.msra.mxu0 %v127
  %263 = vmatmul.bf16.gmra.mxu0 %v253
  %v264 = vpop.f32.mrf.mxu0
  %v265 = vadd.f32 0.0, %v264
  %v266 = vpop.f32.mrf.mxu0
  %267 = vdwg.mxu0
  %v268 = vadd.f32 %v101, %v265
  %v269 = vxor.u32 %v268, 2147483648
  %v270 = vmul.f32 %v269, 1.442695
  %v271 = vpow.pop %v270
  %v272 = vadd.f32 %v271, 1.0
  %v273 = vrcp.pop %v272
  %v274 = vmul.f32 %v272, %v273
  %v275 = vsub.f32 1.0, %v274
  %v276 = vmul.f32 %v273, %v275
  %v277 = vadd.f32 %v273, %v276
  %vm278 = vweird.f32 %v272
  %vm279 = vweird.f32 %v273
  %vm280 = vmor %vm278, %vm279
  %v281 = vsel %vm280, %v273, %v277
  %v282 = vand.u32 2147483647, %v272
  %vm283 = vcmp.eq.f32.partialorder %v282, 8.507059e+37
  %v284 = vand.u32 %v272, 2147483648
  %v285 = vor.u32 1.1754944e-38, %v284
  %v286 = vsel %vm283, %v285, %v281
  %v287 = vmul.f32 1.0, %v286
  %v288 = vtanh.pop %v268
  %v289 = vmul.f32 %v287, %v239
  %291 = vrot.lane.b32.xlu0 %v288, 32
  %v292 = vpop.permute.xlu0 %291
  %v294 = vmul.f32 %v287, %v292
  %296 = vrot.lane.b32.xlu0 %v294, 32
  %v297 = vpop.permute.xlu0 %296
  %v299 = vadd.f32 %v289, %v297
  %v300 = vtanh.pop %v299
  %302 = vrot.lane.b32.xlu0 %v300, 32
  %v303 = vpop.permute.xlu0 %302
  %v305 = vmul.f32 %v287, %v303
  %v306 = vpack.c.bf16 %v305, %v305
  %v308 = vunpack.c.l.b16 %v306
  %v309 = vpack.c.b16 %v308, %v308
  %310 = vrot.lane.b32.xlu0 %v309, 64
  %v311 = vpop.permute.xlu0 %310
  %v313 = vsel %vm131, %v311, 0
  %315 = vmatpush.bf16.msra.mxu0 0
  %316 = vmatpush.bf16.msra.mxu0 0
  %317 = vmatpush.bf16.msra.mxu0 0
  %318 = vmatpush.bf16.msra.mxu0 0
  %319 = vmatpush.bf16.msra.mxu0 0
  %320 = vmatpush.bf16.msra.mxu0 0
  %321 = vmatpush.bf16.msra.mxu0 %v128
  %322 = vmatpush.bf16.msra.mxu0 %v127
  %323 = vmatmul.bf16.gmra.mxu0 %v313
  %v324 = vpop.f32.mrf.mxu0
  %v325 = vadd.f32 0.0, %v324
  %v326 = vpop.f32.mrf.mxu0
  %327 = vdwg.mxu0
  %v328 = vadd.f32 %v103, %v325
  %v329 = vxor.u32 %v328, 2147483648
  %v330 = vmul.f32 %v329, 1.442695
  %v331 = vpow.pop %v330
  %v332 = vadd.f32 %v331, 1.0
  %v333 = vrcp.pop %v332
  %v334 = vmul.f32 %v332, %v333
  %v335 = vsub.f32 1.0, %v334
  %v336 = vmul.f32 %v333, %v335
  %v337 = vadd.f32 %v333, %v336
  %vm338 = vweird.f32 %v332
  %vm339 = vweird.f32 %v333
  %vm340 = vmor %vm338, %vm339
  %v341 = vsel %vm340, %v333, %v337
  %v342 = vand.u32 2147483647, %v332
  %vm343 = vcmp.eq.f32.partialorder %v342, 8.507059e+37
  %v344 = vand.u32 %v332, 2147483648
  %v345 = vor.u32 1.1754944e-38, %v344
  %v346 = vsel %vm343, %v345, %v341
  %v347 = vmul.f32 1.0, %v346
  %v348 = vtanh.pop %v328
  %v349 = vmul.f32 %v347, %v299
  %351 = vrot.lane.b32.xlu0 %v348, 32
  %v352 = vpop.permute.xlu0 %351
  %v354 = vmul.f32 %v347, %v352
  %356 = vrot.lane.b32.xlu0 %v354, 32
  %v357 = vpop.permute.xlu0 %356
  %v359 = vadd.f32 %v349, %v357
  %v360 = vtanh.pop %v359
  %362 = vrot.lane.b32.xlu0 %v360, 32
  %v363 = vpop.permute.xlu0 %362
  %v365 = vmul.f32 %v347, %v363
  %v366 = vpack.c.bf16 %v365, %v365
  %v368 = vunpack.c.l.b16 %v366
  %v369 = vpack.c.b16 %v368, %v368
  %370 = vrot.lane.b32.xlu0 %v369, 64
  %v371 = vpop.permute.xlu0 %370
  %v373 = vsel %vm131, %v371, 0
  %375 = vmatpush.bf16.msra.mxu0 0
  %376 = vmatpush.bf16.msra.mxu0 0
  %377 = vmatpush.bf16.msra.mxu0 0
  %378 = vmatpush.bf16.msra.mxu0 0
  %379 = vmatpush.bf16.msra.mxu0 0
  %380 = vmatpush.bf16.msra.mxu0 0
  %381 = vmatpush.bf16.msra.mxu0 %v128
  %382 = vmatpush.bf16.msra.mxu0 %v127
  %383 = vmatmul.bf16.gmra.mxu0 %v373
  %v384 = vpop.f32.mrf.mxu0
  %v385 = vadd.f32 0.0, %v384
  %v386 = vpop.f32.mrf.mxu0
  %387 = vdwg.mxu0
  %v388 = vadd.f32 %v106, %v385
  %v389 = vxor.u32 %v388, 2147483648
  %v390 = vmul.f32 %v389, 1.442695
  %v391 = vpow.pop %v390
  %v392 = vadd.f32 %v391, 1.0
  %v393 = vrcp.pop %v392
  %v394 = vmul.f32 %v392, %v393
  %v395 = vsub.f32 1.0, %v394
  %v396 = vmul.f32 %v393, %v395
  %v397 = vadd.f32 %v393, %v396
  %vm398 = vweird.f32 %v392
  %vm399 = vweird.f32 %v393
  %vm400 = vmor %vm398, %vm399
  %v401 = vsel %vm400, %v393, %v397
  %v402 = vand.u32 2147483647, %v392
  %vm403 = vcmp.eq.f32.partialorder %v402, 8.507059e+37
  %v404 = vand.u32 %v392, 2147483648
  %v405 = vor.u32 1.1754944e-38, %v404
  %v406 = vsel %vm403, %v405, %v401
  %v407 = vmul.f32 1.0, %v406
  %v408 = vtanh.pop %v388
  %v409 = vmul.f32 %v407, %v359
  %411 = vrot.lane.b32.xlu0 %v408, 32
  %v412 = vpop.permute.xlu0 %411
  %v414 = vmul.f32 %v407, %v412
  %416 = vrot.lane.b32.xlu0 %v414, 32
  %v417 = vpop.permute.xlu0 %416
  %v419 = vadd.f32 %v409, %v417
  %v420 = vtanh.pop %v419
  %422 = vrot.lane.b32.xlu0 %v420, 32
  %v423 = vpop.permute.xlu0 %422
  %v425 = vmul.f32 %v407, %v423
  %v426 = vpack.c.bf16 %v425, %v425
  %v428 = vunpack.c.l.b16 %v426
  %v429 = vpack.c.b16 %v428, %v428
  %430 = vrot.lane.b32.xlu0 %v429, 64
  %v431 = vpop.permute.xlu0 %430
  %v433 = vsel %vm131, %v431, 0
  %435 = vmatpush.bf16.msra.mxu0 0
  %436 = vmatpush.bf16.msra.mxu0 0
  %437 = vmatpush.bf16.msra.mxu0 0
  %438 = vmatpush.bf16.msra.mxu0 0
  %439 = vmatpush.bf16.msra.mxu0 0
  %440 = vmatpush.bf16.msra.mxu0 0
  %441 = vmatpush.bf16.msra.mxu0 %v128
  %442 = vmatpush.bf16.msra.mxu0 %v127
  %443 = vmatmul.bf16.gmra.mxu0 %v433
  %v444 = vpop.f32.mrf.mxu0
  %v445 = vadd.f32 0.0, %v444
  %v446 = vpop.f32.mrf.mxu0
  %447 = vdwg.mxu0
  %v448 = vadd.f32 %v108, %v445
  %v449 = vxor.u32 %v448, 2147483648
  %v450 = vmul.f32 %v449, 1.442695
  %v451 = vpow.pop %v450
  %v452 = vadd.f32 %v451, 1.0
  %v453 = vrcp.pop %v452
  %v454 = vmul.f32 %v452, %v453
  %v455 = vsub.f32 1.0, %v454
  %v456 = vmul.f32 %v453, %v455
  %v457 = vadd.f32 %v453, %v456
  %vm458 = vweird.f32 %v452
  %vm459 = vweird.f32 %v453
  %vm460 = vmor %vm458, %vm459
  %v461 = vsel %vm460, %v453, %v457
  %v462 = vand.u32 2147483647, %v452
  %vm463 = vcmp.eq.f32.partialorder %v462, 8.507059e+37
  %v464 = vand.u32 %v452, 2147483648
  %v465 = vor.u32 1.1754944e-38, %v464
  %v466 = vsel %vm463, %v465, %v461
  %v467 = vmul.f32 1.0, %v466
  %v468 = vtanh.pop %v448
  %v469 = vmul.f32 %v467, %v419
  %471 = vrot.lane.b32.xlu0 %v468, 32
  %v472 = vpop.permute.xlu0 %471
  %v474 = vmul.f32 %v467, %v472
  %476 = vrot.lane.b32.xlu0 %v474, 32
  %v477 = vpop.permute.xlu0 %476
  %v479 = vadd.f32 %v469, %v477
  %v480 = vtanh.pop %v479
  %482 = vrot.lane.b32.xlu0 %v480, 32
  %v483 = vpop.permute.xlu0 %482
  %v485 = vmul.f32 %v467, %v483
  %v486 = vpack.c.bf16 %v485, %v485
  %v488 = vunpack.c.l.b16 %v486
  %v489 = vpack.c.b16 %v488, %v488
  %490 = vrot.lane.b32.xlu0 %v489, 64
  %v491 = vpop.permute.xlu0 %490
  %v493 = vsel %vm131, %v491, 0
  %495 = vmatpush.bf16.msra.mxu0 0
  %496 = vmatpush.bf16.msra.mxu0 0
  %497 = vmatpush.bf16.msra.mxu0 0
  %498 = vmatpush.bf16.msra.mxu0 0
  %499 = vmatpush.bf16.msra.mxu0 0
  %500 = vmatpush.bf16.msra.mxu0 0
  %501 = vmatpush.bf16.msra.mxu0 %v128
  %502 = vmatpush.bf16.msra.mxu0 %v127
  %503 = vmatmul.bf16.gmra.mxu0 %v493
  %v504 = vpop.f32.mrf.mxu0
  %v505 = vadd.f32 0.0, %v504
  %v506 = vpop.f32.mrf.mxu0
  %507 = vdwg.mxu0
  %v508 = vadd.f32 %v111, %v505
  %v509 = vxor.u32 %v508, 2147483648
  %v510 = vmul.f32 %v509, 1.442695
  %v511 = vpow.pop %v510
  %v512 = vadd.f32 %v511, 1.0
  %v513 = vrcp.pop %v512
  %v514 = vmul.f32 %v512, %v513
  %v515 = vsub.f32 1.0, %v514
  %v516 = vmul.f32 %v513, %v515
  %v517 = vadd.f32 %v513, %v516
  %vm518 = vweird.f32 %v512
  %vm519 = vweird.f32 %v513
  %vm520 = vmor %vm518, %vm519
  %v521 = vsel %vm520, %v513, %v517
  %v522 = vand.u32 2147483647, %v512
  %vm523 = vcmp.eq.f32.partialorder %v522, 8.507059e+37
  %v524 = vand.u32 %v512, 2147483648
  %v525 = vor.u32 1.1754944e-38, %v524
  %v526 = vsel %vm523, %v525, %v521
  %v527 = vmul.f32 1.0, %v526
  %v528 = vtanh.pop %v508
  %v529 = vmul.f32 %v527, %v479
  %531 = vrot.lane.b32.xlu0 %v528, 32
  %v532 = vpop.permute.xlu0 %531
  %v534 = vmul.f32 %v527, %v532
  %536 = vrot.lane.b32.xlu0 %v534, 32
  %v537 = vpop.permute.xlu0 %536
  %v539 = vadd.f32 %v529, %v537
  %v540 = vtanh.pop %v539
  %542 = vrot.lane.b32.xlu0 %v540, 32
  %v543 = vpop.permute.xlu0 %542
  %v545 = vmul.f32 %v527, %v543
  %v546 = vpack.c.bf16 %v545, %v545
  %v548 = vunpack.c.l.b16 %v546
  %v549 = vpack.c.b16 %v548, %v548
  %550 = vrot.lane.b32.xlu0 %v549, 64
  %v551 = vpop.permute.xlu0 %550
  %v553 = vsel %vm131, %v551, 0
  %555 = vmatpush.bf16.msra.mxu0 0
  %556 = vmatpush.bf16.msra.mxu0 0
  %557 = vmatpush.bf16.msra.mxu0 0
  %558 = vmatpush.bf16.msra.mxu0 0
  %559 = vmatpush.bf16.msra.mxu0 0
  %560 = vmatpush.bf16.msra.mxu0 0
  %561 = vmatpush.bf16.msra.mxu0 %v128
  %562 = vmatpush.bf16.msra.mxu0 %v127
  %563 = vmatmul.bf16.gmra.mxu0 %v553
  %v564 = vpop.f32.mrf.mxu0
  %v565 = vadd.f32 0.0, %v564
  %v566 = vpop.f32.mrf.mxu0
  %567 = vdwg.mxu0
  %v568 = vadd.f32 %v113, %v565
  %v569 = vxor.u32 %v568, 2147483648
  %v570 = vmul.f32 %v569, 1.442695
  %v571 = vpow.pop %v570
  %v572 = vadd.f32 %v571, 1.0
  %v573 = vrcp.pop %v572
  %v574 = vmul.f32 %v572, %v573
  %v575 = vsub.f32 1.0, %v574
  %v576 = vmul.f32 %v573, %v575
  %v577 = vadd.f32 %v573, %v576
  %vm578 = vweird.f32 %v572
  %vm579 = vweird.f32 %v573
  %vm580 = vmor %vm578, %vm579
  %v581 = vsel %vm580, %v573, %v577
  %v582 = vand.u32 2147483647, %v572
  %vm583 = vcmp.eq.f32.partialorder %v582, 8.507059e+37
  %v584 = vand.u32 %v572, 2147483648
  %v585 = vor.u32 1.1754944e-38, %v584
  %v586 = vsel %vm583, %v585, %v581
  %v587 = vmul.f32 1.0, %v586
  %v588 = vtanh.pop %v568
  %v589 = vmul.f32 %v587, %v539
  %591 = vrot.lane.b32.xlu0 %v588, 32
  %v592 = vpop.permute.xlu0 %591
  %v594 = vmul.f32 %v587, %v592
  %596 = vrot.lane.b32.xlu0 %v594, 32
  %v597 = vpop.permute.xlu0 %596
  %v599 = vadd.f32 %v589, %v597
  %v600 = vtanh.pop %v599
  %602 = vrot.lane.b32.xlu0 %v600, 32
  %v603 = vpop.permute.xlu0 %602
  %v605 = vmul.f32 %v587, %v603
  %v606 = vpack.c.bf16 %v605, %v605
  %v607 = vld [vmem:[%s4] sm:$0xf]
  %v608 = vld [vmem:[%s4 + $0x4] sm:$0xf]
  %v609 = vld [vmem:[%s4 + $0x8] sm:$0xf]
  %v610 = vld [vmem:[%s4 + $0xc] sm:$0xf]
  %v611 = vld [vmem:[%s6] sm:$0x1]
  %v613 = vperm.slane %v611, 0
  %v616 = vunpack.c.l.b16 %v606
  %v617 = vpack.c.b16 %v248, %v188
  %v618 = vpack.c.b16 %v368, %v308
  %v619 = vpack.c.b16 %v488, %v428
  %v620 = vpack.c.b16 %v616, %v548
  %621 = vrot.lane.b32.xlu0 %v617, 64
  %v622 = vpop.permute.xlu0 %621
  %623 = vrot.lane.b32.xlu0 %v618, 64
  %v624 = vpop.permute.xlu0 %623
  %625 = vrot.lane.b32.xlu0 %v619, 64
  %v626 = vpop.permute.xlu0 %625
  %627 = vrot.lane.b32.xlu0 %v620, 64
  %v628 = vpop.permute.xlu0 %627
  %v633 = vunpack.c.l.b16 %v607
  %v634 = vunpack.c.l.b16 %v608
  %v635 = vunpack.c.l.b16 %v609
  %v636 = vunpack.c.l.b16 %v610
  %v637 = vpack.c.b16 %v634, %v633
  %v638 = vpack.c.b16 %v636, %v635
  %v642 = vsel %vm131, %v622, 0
  %v645 = vsel %vm131, %v624, 0
  %v648 = vsel %vm131, %v626, 0
  %v651 = vsel %vm131, %v628, 0
  %653 = vmatpush.bf16.msra.mxu0 0
  %654 = vmatpush.bf16.msra.mxu0 0
  %655 = vmatpush.bf16.msra.mxu0 0
  %656 = vmatpush.bf16.msra.mxu0 0
  %657 = vmatpush.bf16.msra.mxu0 0
  %658 = vmatpush.bf16.msra.mxu0 0
  %659 = vmatpush.bf16.msra.mxu0 %v638
  %660 = vmatpush.bf16.msra.mxu0 %v637
  %661 = vmatmul.bf16.gmra.mxu0 %v642
  %v662 = vpop.f32.mrf.mxu0
  %v663 = vadd.f32 %v613, %v662
  %v664 = vpop.f32.mrf.mxu0
  %v665 = vadd.f32 %v613, %v664
  %666 = vmatmul.bf16.gmra.mxu0 %v645
  %v667 = vpop.f32.mrf.mxu0
  %v668 = vadd.f32 %v613, %v667
  %v669 = vpop.f32.mrf.mxu0
  %v670 = vadd.f32 %v613, %v669
  %671 = vmatmul.bf16.gmra.mxu0 %v648
  %v672 = vpop.f32.mrf.mxu0
  %v673 = vadd.f32 %v613, %v672
  %v674 = vpop.f32.mrf.mxu0
  %v675 = vadd.f32 %v613, %v674
  %676 = vmatmul.bf16.gmra.mxu0 %v651
  %v677 = vpop.f32.mrf.mxu0
  %v678 = vadd.f32 %v613, %v677
  %v679 = vpop.f32.mrf.mxu0
  %v680 = vadd.f32 %v613, %v679
  %681 = vdwg.mxu0
  %v682 = vld [vmem:[%s5] sm:$0xf]
  %v683 = vld [vmem:[%s5 + $0x4] sm:$0xf]
  %v684 = vld [vmem:[%s5 + $0x8] sm:$0xf]
  %v685 = vld [vmem:[%s5 + $0xc] sm:$0xf]
  %v690 = vunpack.c.l.b16 %v682
  %v691 = vunpack.c.l.b16 %v683
  %v692 = vunpack.c.l.b16 %v684
  %v693 = vunpack.c.l.b16 %v685
  %v694 = vpack.c.b16 %v691, %v690
  %v695 = vpack.c.b16 %v693, %v692
  %698 = vmatpush.bf16.msra.mxu0 0
  %699 = vmatpush.bf16.msra.mxu0 0
  %700 = vmatpush.bf16.msra.mxu0 0
  %701 = vmatpush.bf16.msra.mxu0 0
  %702 = vmatpush.bf16.msra.mxu0 0
  %703 = vmatpush.bf16.msra.mxu0 0
  %704 = vmatpush.bf16.msra.mxu0 %v695
  %705 = vmatpush.bf16.msra.mxu0 %v694
  %706 = vmatmul.bf16.gmra.mxu0 %v133
  %v707 = vpop.f32.mrf.mxu0
  %v708 = vadd.f32 0.0, %v707
  %v709 = vpop.f32.mrf.mxu0
  %710 = vdwg.mxu0
  %v711 = vadd.f32 %v663, %v708
  %v712 = vxor.u32 %v711, 2147483648
  %v713 = vmul.f32 %v712, 1.442695
  %v714 = vpow.pop %v713
  %v715 = vadd.f32 %v714, 1.0
  %v716 = vrcp.pop %v715
  %v717 = vmul.f32 %v715, %v716
  %v718 = vsub.f32 1.0, %v717
  %v719 = vmul.f32 %v716, %v718
  %v720 = vadd.f32 %v716, %v719
  %vm721 = vweird.f32 %v715
  %vm722 = vweird.f32 %v716
  %vm723 = vmor %vm721, %vm722
  %v724 = vsel %vm723, %v716, %v720
  %v725 = vand.u32 2147483647, %v715
  %vm726 = vcmp.eq.f32.partialorder %v725, 8.507059e+37
  %v727 = vand.u32 %v715, 2147483648
  %v728 = vor.u32 1.1754944e-38, %v727
  %v729 = vsel %vm726, %v728, %v724
  %v730 = vmul.f32 1.0, %v729
  %v731 = vtanh.pop %v711
  %v732 = vmul.f32 %v730, 0.0
  %734 = vrot.lane.b32.xlu0 %v731, 32
  %v735 = vpop.permute.xlu0 %734
  %v737 = vmul.f32 %v730, %v735
  %739 = vrot.lane.b32.xlu0 %v737, 32
  %v740 = vpop.permute.xlu0 %739
  %v742 = vadd.f32 %v732, %v740
  %v743 = vtanh.pop %v742
  %745 = vrot.lane.b32.xlu0 %v743, 32
  %v746 = vpop.permute.xlu0 %745
  %v748 = vmul.f32 %v730, %v746
  %v749 = vpack.c.bf16 %v748, %v748
  %751 = vrot.lane.b32.xlu0 %v749, 64
  %v752 = vpop.permute.xlu0 %751
  %v754 = vsel %vm131, %v752, 0
  %756 = vmatpush.bf16.msra.mxu0 0
  %757 = vmatpush.bf16.msra.mxu0 0
  %758 = vmatpush.bf16.msra.mxu0 0
  %759 = vmatpush.bf16.msra.mxu0 0
  %760 = vmatpush.bf16.msra.mxu0 0
  %761 = vmatpush.bf16.msra.mxu0 0
  %762 = vmatpush.bf16.msra.mxu0 %v695
  %763 = vmatpush.bf16.msra.mxu0 %v694
  %764 = vmatmul.bf16.gmra.mxu0 %v754
  %v765 = vpop.f32.mrf.mxu0
  %v766 = vadd.f32 0.0, %v765
  %v767 = vpop.f32.mrf.mxu0
  %768 = vdwg.mxu0
  %v769 = vadd.f32 %v665, %v766
  %v770 = vxor.u32 %v769, 2147483648
  %v771 = vmul.f32 %v770, 1.442695
  %v772 = vpow.pop %v771
  %v773 = vadd.f32 %v772, 1.0
  %v774 = vrcp.pop %v773
  %v775 = vmul.f32 %v773, %v774
  %v776 = vsub.f32 1.0, %v775
  %v777 = vmul.f32 %v774, %v776
  %v778 = vadd.f32 %v774, %v777
  %vm779 = vweird.f32 %v773
  %vm780 = vweird.f32 %v774
  %vm781 = vmor %vm779, %vm780
  %v782 = vsel %vm781, %v774, %v778
  %v783 = vand.u32 2147483647, %v773
  %vm784 = vcmp.eq.f32.partialorder %v783, 8.507059e+37
  %v785 = vand.u32 %v773, 2147483648
  %v786 = vor.u32 1.1754944e-38, %v785
  %v787 = vsel %vm784, %v786, %v782
  %v788 = vmul.f32 1.0, %v787
  %v789 = vtanh.pop %v769
  %v790 = vmul.f32 %v788, %v742
  %792 = vrot.lane.b32.xlu0 %v789, 32
  %v793 = vpop.permute.xlu0 %792
  %v795 = vmul.f32 %v788, %v793
  %797 = vrot.lane.b32.xlu0 %v795, 32
  %v798 = vpop.permute.xlu0 %797
  %v800 = vadd.f32 %v790, %v798
  %v801 = vtanh.pop %v800
  %803 = vrot.lane.b32.xlu0 %v801, 32
  %v804 = vpop.permute.xlu0 %803
  %v806 = vmul.f32 %v788, %v804
  %v807 = vpack.c.bf16 %v806, %v806
  %809 = vrot.lane.b32.xlu0 %v807, 64
  %v810 = vpop.permute.xlu0 %809
  %v812 = vsel %vm131, %v810, 0
  %814 = vmatpush.bf16.msra.mxu0 0
  %815 = vmatpush.bf16.msra.mxu0 0
  %816 = vmatpush.bf16.msra.mxu0 0
  %817 = vmatpush.bf16.msra.mxu0 0
  %818 = vmatpush.bf16.msra.mxu0 0
  %819 = vmatpush.bf16.msra.mxu0 0
  %820 = vmatpush.bf16.msra.mxu0 %v695
  %821 = vmatpush.bf16.msra.mxu0 %v694
  %822 = vmatmul.bf16.gmra.mxu0 %v812
  %v823 = vpop.f32.mrf.mxu0
  %v824 = vadd.f32 0.0, %v823
  %v825 = vpop.f32.mrf.mxu0
  %826 = vdwg.mxu0
  %v827 = vadd.f32 %v668, %v824
  %v828 = vxor.u32 %v827, 2147483648
  %v829 = vmul.f32 %v828, 1.442695
  %v830 = vpow.pop %v829
  %v831 = vadd.f32 %v830, 1.0
  %v832 = vrcp.pop %v831
  %v833 = vmul.f32 %v831, %v832
  %v834 = vsub.f32 1.0, %v833
  %v835 = vmul.f32 %v832, %v834
  %v836 = vadd.f32 %v832, %v835
  %vm837 = vweird.f32 %v831
  %vm838 = vweird.f32 %v832
  %vm839 = vmor %vm837, %vm838
  %v840 = vsel %vm839, %v832, %v836
  %v841 = vand.u32 2147483647, %v831
  %vm842 = vcmp.eq.f32.partialorder %v841, 8.507059e+37
  %v843 = vand.u32 %v831, 2147483648
  %v844 = vor.u32 1.1754944e-38, %v843
  %v845 = vsel %vm842, %v844, %v840
  %v846 = vmul.f32 1.0, %v845
  %v847 = vtanh.pop %v827
  %v848 = vmul.f32 %v846, %v800
  %850 = vrot.lane.b32.xlu0 %v847, 32
  %v851 = vpop.permute.xlu0 %850
  %v853 = vmul.f32 %v846, %v851
  %855 = vrot.lane.b32.xlu0 %v853, 32
  %v856 = vpop.permute.xlu0 %855
  %v858 = vadd.f32 %v848, %v856
  %v859 = vtanh.pop %v858
  %861 = vrot.lane.b32.xlu0 %v859, 32
  %v862 = vpop.permute.xlu0 %861
  %v864 = vmul.f32 %v846, %v862
  %v865 = vpack.c.bf16 %v864, %v864
  %867 = vrot.lane.b32.xlu0 %v865, 64
  %v868 = vpop.permute.xlu0 %867
  %v870 = vsel %vm131, %v868, 0
  %872 = vmatpush.bf16.msra.mxu0 0
  %873 = vmatpush.bf16.msra.mxu0 0
  %874 = vmatpush.bf16.msra.mxu0 0
  %875 = vmatpush.bf16.msra.mxu0 0
  %876 = vmatpush.bf16.msra.mxu0 0
  %877 = vmatpush.bf16.msra.mxu0 0
  %878 = vmatpush.bf16.msra.mxu0 %v695
  %879 = vmatpush.bf16.msra.mxu0 %v694
  %880 = vmatmul.bf16.gmra.mxu0 %v870
  %v881 = vpop.f32.mrf.mxu0
  %v882 = vadd.f32 0.0, %v881
  %v883 = vpop.f32.mrf.mxu0
  %884 = vdwg.mxu0
  %v885 = vadd.f32 %v670, %v882
  %v886 = vxor.u32 %v885, 2147483648
  %v887 = vmul.f32 %v886, 1.442695
  %v888 = vpow.pop %v887
  %v889 = vadd.f32 %v888, 1.0
  %v890 = vrcp.pop %v889
  %v891 = vmul.f32 %v889, %v890
  %v892 = vsub.f32 1.0, %v891
  %v893 = vmul.f32 %v890, %v892
  %v894 = vadd.f32 %v890, %v893
  %vm895 = vweird.f32 %v889
  %vm896 = vweird.f32 %v890
  %vm897 = vmor %vm895, %vm896
  %v898 = vsel %vm897, %v890, %v894
  %v899 = vand.u32 2147483647, %v889
  %vm900 = vcmp.eq.f32.partialorder %v899, 8.507059e+37
  %v901 = vand.u32 %v889, 2147483648
  %v902 = vor.u32 1.1754944e-38, %v901
  %v903 = vsel %vm900, %v902, %v898
  %v904 = vmul.f32 1.0, %v903
  %v905 = vtanh.pop %v885
  %v906 = vmul.f32 %v904, %v858
  %908 = vrot.lane.b32.xlu0 %v905, 32
  %v909 = vpop.permute.xlu0 %908
  %v911 = vmul.f32 %v904, %v909
  %913 = vrot.lane.b32.xlu0 %v911, 32
  %v914 = vpop.permute.xlu0 %913
  %v916 = vadd.f32 %v906, %v914
  %v917 = vtanh.pop %v916
  %919 = vrot.lane.b32.xlu0 %v917, 32
  %v920 = vpop.permute.xlu0 %919
  %v922 = vmul.f32 %v904, %v920
  %v923 = vpack.c.bf16 %v922, %v922
  %925 = vrot.lane.b32.xlu0 %v923, 64
  %v926 = vpop.permute.xlu0 %925
  %v928 = vsel %vm131, %v926, 0
  %930 = vmatpush.bf16.msra.mxu0 0
  %931 = vmatpush.bf16.msra.mxu0 0
  %932 = vmatpush.bf16.msra.mxu0 0
  %933 = vmatpush.bf16.msra.mxu0 0
  %934 = vmatpush.bf16.msra.mxu0 0
  %935 = vmatpush.bf16.msra.mxu0 0
  %936 = vmatpush.bf16.msra.mxu0 %v695
  %937 = vmatpush.bf16.msra.mxu0 %v694
  %938 = vmatmul.bf16.gmra.mxu0 %v928
  %v939 = vpop.f32.mrf.mxu0
  %v940 = vadd.f32 0.0, %v939
  %v941 = vpop.f32.mrf.mxu0
  %942 = vdwg.mxu0
  %v943 = vadd.f32 %v673, %v940
  %v944 = vxor.u32 %v943, 2147483648
  %v945 = vmul.f32 %v944, 1.442695
  %v946 = vpow.pop %v945
  %v947 = vadd.f32 %v946, 1.0
  %v948 = vrcp.pop %v947
  %v949 = vmul.f32 %v947, %v948
  %v950 = vsub.f32 1.0, %v949
  %v951 = vmul.f32 %v948, %v950
  %v952 = vadd.f32 %v948, %v951
  %vm953 = vweird.f32 %v947
  %vm954 = vweird.f32 %v948
  %vm955 = vmor %vm953, %vm954
  %v956 = vsel %vm955, %v948, %v952
  %v957 = vand.u32 2147483647, %v947
  %vm958 = vcmp.eq.f32.partialorder %v957, 8.507059e+37
  %v959 = vand.u32 %v947, 2147483648
  %v960 = vor.u32 1.1754944e-38, %v959
  %v961 = vsel %vm958, %v960, %v956
  %v962 = vmul.f32 1.0, %v961
  %v963 = vtanh.pop %v943
  %v964 = vmul.f32 %v962, %v916
  %966 = vrot.lane.b32.xlu0 %v963, 32
  %v967 = vpop.permute.xlu0 %966
  %v969 = vmul.f32 %v962, %v967
  %971 = vrot.lane.b32.xlu0 %v969, 32
  %v972 = vpop.permute.xlu0 %971
  %v974 = vadd.f32 %v964, %v972
  %v975 = vtanh.pop %v974
  %977 = vrot.lane.b32.xlu0 %v975, 32
  %v978 = vpop.permute.xlu0 %977
  %v980 = vmul.f32 %v962, %v978
  %v981 = vpack.c.bf16 %v980, %v980
  %983 = vrot.lane.b32.xlu0 %v981, 64
  %v984 = vpop.permute.xlu0 %983
  %v986 = vsel %vm131, %v984, 0
  %988 = vmatpush.bf16.msra.mxu0 0
  %989 = vmatpush.bf16.msra.mxu0 0
  %990 = vmatpush.bf16.msra.mxu0 0
  %991 = vmatpush.bf16.msra.mxu0 0
  %992 = vmatpush.bf16.msra.mxu0 0
  %993 = vmatpush.bf16.msra.mxu0 0
  %994 = vmatpush.bf16.msra.mxu0 %v695
  %995 = vmatpush.bf16.msra.mxu0 %v694
  %996 = vmatmul.bf16.gmra.mxu0 %v986
  %v997 = vpop.f32.mrf.mxu0
  %v998 = vadd.f32 0.0, %v997
  %v999 = vpop.f32.mrf.mxu0
  %1000 = vdwg.mxu0
  %v1001 = vadd.f32 %v675, %v998
  %v1002 = vxor.u32 %v1001, 2147483648
  %v1003 = vmul.f32 %v1002, 1.442695
  %v1004 = vpow.pop %v1003
  %v1005 = vadd.f32 %v1004, 1.0
  %v1006 = vrcp.pop %v1005
  %v1007 = vmul.f32 %v1005, %v1006
  %v1008 = vsub.f32 1.0, %v1007
  %v1009 = vmul.f32 %v1006, %v1008
  %v1010 = vadd.f32 %v1006, %v1009
  %vm1011 = vweird.f32 %v1005
  %vm1012 = vweird.f32 %v1006
  %vm1013 = vmor %vm1011, %vm1012
  %v1014 = vsel %vm1013, %v1006, %v1010
  %v1015 = vand.u32 2147483647, %v1005
  %vm1016 = vcmp.eq.f32.partialorder %v1015, 8.507059e+37
  %v1017 = vand.u32 %v1005, 2147483648
  %v1018 = vor.u32 1.1754944e-38, %v1017
  %v1019 = vsel %vm1016, %v1018, %v1014
  %v1020 = vmul.f32 1.0, %v1019
  %v1021 = vtanh.pop %v1001
  %v1022 = vmul.f32 %v1020, %v974
  %1024 = vrot.lane.b32.xlu0 %v1021, 32
  %v1025 = vpop.permute.xlu0 %1024
  %v1027 = vmul.f32 %v1020, %v1025
  %1029 = vrot.lane.b32.xlu0 %v1027, 32
  %v1030 = vpop.permute.xlu0 %1029
  %v1032 = vadd.f32 %v1022, %v1030
  %v1033 = vtanh.pop %v1032
  %1035 = vrot.lane.b32.xlu0 %v1033, 32
  %v1036 = vpop.permute.xlu0 %1035
  %v1038 = vmul.f32 %v1020, %v1036
  %v1039 = vpack.c.bf16 %v1038, %v1038
  %1041 = vrot.lane.b32.xlu0 %v1039, 64
  %v1042 = vpop.permute.xlu0 %1041
  %v1044 = vsel %vm131, %v1042, 0
  %1046 = vmatpush.bf16.msra.mxu0 0
  %1047 = vmatpush.bf16.msra.mxu0 0
  %1048 = vmatpush.bf16.msra.mxu0 0
  %1049 = vmatpush.bf16.msra.mxu0 0
  %1050 = vmatpush.bf16.msra.mxu0 0
  %1051 = vmatpush.bf16.msra.mxu0 0
  %1052 = vmatpush.bf16.msra.mxu0 %v695
  %1053 = vmatpush.bf16.msra.mxu0 %v694
  %1054 = vmatmul.bf16.gmra.mxu0 %v1044
  %v1055 = vpop.f32.mrf.mxu0
  %v1056 = vadd.f32 0.0, %v1055
  %v1057 = vpop.f32.mrf.mxu0
  %1058 = vdwg.mxu0
  %v1059 = vadd.f32 %v678, %v1056
  %v1060 = vxor.u32 %v1059, 2147483648
  %v1061 = vmul.f32 %v1060, 1.442695
  %v1062 = vpow.pop %v1061
  %v1063 = vadd.f32 %v1062, 1.0
  %v1064 = vrcp.pop %v1063
  %v1065 = vmul.f32 %v1063, %v1064
  %v1066 = vsub.f32 1.0, %v1065
  %v1067 = vmul.f32 %v1064, %v1066
  %v1068 = vadd.f32 %v1064, %v1067
  %vm1069 = vweird.f32 %v1063
  %vm1070 = vweird.f32 %v1064
  %vm1071 = vmor %vm1069, %vm1070
  %v1072 = vsel %vm1071, %v1064, %v1068
  %v1073 = vand.u32 2147483647, %v1063
  %vm1074 = vcmp.eq.f32.partialorder %v1073, 8.507059e+37
  %v1075 = vand.u32 %v1063, 2147483648
  %v1076 = vor.u32 1.1754944e-38, %v1075
  %v1077 = vsel %vm1074, %v1076, %v1072
  %v1078 = vmul.f32 1.0, %v1077
  %v1079 = vtanh.pop %v1059
  %v1080 = vmul.f32 %v1078, %v1032
  %1082 = vrot.lane.b32.xlu0 %v1079, 32
  %v1083 = vpop.permute.xlu0 %1082
  %v1085 = vmul.f32 %v1078, %v1083
  %1087 = vrot.lane.b32.xlu0 %v1085, 32
  %v1088 = vpop.permute.xlu0 %1087
  %v1090 = vadd.f32 %v1080, %v1088
  %v1091 = vtanh.pop %v1090
  %1093 = vrot.lane.b32.xlu0 %v1091, 32
  %v1094 = vpop.permute.xlu0 %1093
  %v1096 = vmul.f32 %v1078, %v1094
  %v1097 = vpack.c.bf16 %v1096, %v1096
  %1099 = vrot.lane.b32.xlu0 %v1097, 64
  %v1100 = vpop.permute.xlu0 %1099
  %v1102 = vsel %vm131, %v1100, 0
  %1104 = vmatpush.bf16.msra.mxu0 0
  %1105 = vmatpush.bf16.msra.mxu0 0
  %1106 = vmatpush.bf16.msra.mxu0 0
  %1107 = vmatpush.bf16.msra.mxu0 0
  %1108 = vmatpush.bf16.msra.mxu0 0
  %1109 = vmatpush.bf16.msra.mxu0 0
  %1110 = vmatpush.bf16.msra.mxu0 %v695
  %1111 = vmatpush.bf16.msra.mxu0 %v694
  %1112 = vmatmul.bf16.gmra.mxu0 %v1102
  %v1113 = vpop.f32.mrf.mxu0
  %v1114 = vadd.f32 0.0, %v1113
  %v1115 = vpop.f32.mrf.mxu0
  %1116 = vdwg.mxu0
  %v1117 = vadd.f32 %v680, %v1114
  %v1118 = vxor.u32 %v1117, 2147483648
  %v1119 = vmul.f32 %v1118, 1.442695
  %v1120 = vpow.pop %v1119
  %v1121 = vadd.f32 %v1120, 1.0
  %v1122 = vrcp.pop %v1121
  %v1123 = vmul.f32 %v1121, %v1122
  %v1124 = vsub.f32 1.0, %v1123
  %v1125 = vmul.f32 %v1122, %v1124
  %v1126 = vadd.f32 %v1122, %v1125
  %vm1127 = vweird.f32 %v1121
  %vm1128 = vweird.f32 %v1122
  %vm1129 = vmor %vm1127, %vm1128
  %v1130 = vsel %vm1129, %v1122, %v1126
  %v1131 = vand.u32 2147483647, %v1121
  %vm1132 = vcmp.eq.f32.partialorder %v1131, 8.507059e+37
  %v1133 = vand.u32 %v1121, 2147483648
  %v1134 = vor.u32 1.1754944e-38, %v1133
  %v1135 = vsel %vm1132, %v1134, %v1130
  %v1136 = vmul.f32 1.0, %v1135
  %v1137 = vtanh.pop %v1117
  %v1138 = vmul.f32 %v1136, %v1090
  %1140 = vrot.lane.b32.xlu0 %v1137, 32
  %v1141 = vpop.permute.xlu0 %1140
  %v1143 = vmul.f32 %v1136, %v1141
  %1145 = vrot.lane.b32.xlu0 %v1143, 32
  %v1146 = vpop.permute.xlu0 %1145
  %v1148 = vadd.f32 %v1138, %v1146
  %v1149 = vtanh.pop %v1148
  %1151 = vrot.lane.b32.xlu0 %v1149, 32
  %v1152 = vpop.permute.xlu0 %1151
  %v1154 = vmul.f32 %v1136, %v1152
  %v1155 = vpack.c.bf16 %v1154, %v1154
  %v1156 = vld [vmem:[%s7] sm:$0xf]
  %v1157 = vld [vmem:[%s7 + $0x4] sm:$0xf]
  %v1158 = vld [vmem:[%s7 + $0x8] sm:$0xf]
  %v1159 = vld [vmem:[%s7 + $0xc] sm:$0xf]
  %v1160 = vld [vmem:[%s8] sm:$0x1]
  %v1162 = vperm.slane %v1160, 0
  %1165 = vrot.lane.b32.xlu0 %v1155, 64
  %v1166 = vpop.permute.xlu0 %1165
  %v1171 = vunpack.c.l.b16 %v1156
  %v1172 = vunpack.c.l.b16 %v1157
  %v1173 = vunpack.c.l.b16 %v1158
  %v1174 = vunpack.c.l.b16 %v1159
  %v1175 = vpack.c.b16 %v1172, %v1171
  %v1176 = vpack.c.b16 %v1174, %v1173
  %v1180 = vsel %vm131, %v1166, 0
  %1182 = vmatpush.bf16.msra.mxu0 0
  %1183 = vmatpush.bf16.msra.mxu0 0
  %1184 = vmatpush.bf16.msra.mxu0 0
  %1185 = vmatpush.bf16.msra.mxu0 0
  %1186 = vmatpush.bf16.msra.mxu0 0
  %1187 = vmatpush.bf16.msra.mxu0 0
  %1188 = vmatpush.bf16.msra.mxu0 %v1176
  %1189 = vmatpush.bf16.msra.mxu0 %v1175
  %1190 = vmatmul.bf16.gmra.mxu0 %v1180
  %v1191 = vpop.f32.mrf.mxu0
  %v1192 = vadd.f32 %v1162, %v1191
  %v1193 = vpop.f32.mrf.mxu0
  %1194 = vdwg.mxu0
  %vm1195 = vcmask 64512
  %v1196 = vsel %vm1195, %v1192, -inf
  %1197 = vmax.xlane.f32.xlu0 %v1196
  %v1198 = vpop.xlane.xlu0 %1197
  %v1199 = vsub.f32 %v1192, %v1198
  %v1200 = vmul.f32 %v1199, 1.442695
  %v1201 = vpow.pop %v1200
  %v1202 = vsel %vm1195, %v1201, 0.0
  %1203 = vadd.xlane.f32.xlu0 %v1202
  %v1204 = vpop.xlane.xlu0 %1203
  %v1205 = vrcp.pop %v1204
  %v1206 = vmul.f32 %v1204, %v1205
  %v1207 = vsub.f32 1.0, %v1206
  %v1208 = vmul.f32 %v1205, %v1207
  %v1209 = vadd.f32 %v1205, %v1208
  %vm1210 = vweird.f32 %v1204
  %vm1211 = vweird.f32 %v1205
  %vm1212 = vmor %vm1210, %vm1211
  %v1213 = vsel %vm1212, %v1205, %v1209
  %v1214 = vand.u32 2147483647, %v1204
  %vm1215 = vcmp.eq.f32.partialorder %v1214, 8.507059e+37
  %v1216 = vand.u32 %v1204, 2147483648
  %v1217 = vor.u32 1.1754944e-38, %v1216
  %v1218 = vsel %vm1215, %v1217, %v1213
  %v1219 = vmul.f32 %v1201, %v1218
  %1220 = vst.msk [vmem:[%s9] sm:$0xff] %vm1195, %v1219
  // Predicated region
  $region38: #{lstm_classifier_forward_impl.1} parent=0 // pred_check
    _
  $region39: #{lstm_classifier_forward_impl.1} parent=0 // pred_check_branch
    %1222 = sbr.rel (0) target = $region41
  $region40: #{lstm_classifier_forward_impl.1} parent=0 // pred_region
    _
  $region41: #{lstm_classifier_forward_impl.1} parent=0 // pred_fallthru
    _
  // Predicated region
  $region42: #{lstm_classifier_forward_impl.1} parent=0 // pred_check
    _
  $region43: #{lstm_classifier_forward_impl.1} parent=0 // pred_check_branch
    %1224 = sbr.rel (0) target = $region45
  $region44: #{lstm_classifier_forward_impl.1} parent=0 // pred_region
    _
  $region45: #{lstm_classifier_forward_impl.1} parent=0 // pred_fallthru
    _

</llo_original>
